<compile_context>
chip_gen: v5e
topology: v5e:2x2
jax: 0.10.0
libtpu: 0.0.40
codegen_flags: <defaults>
</compile_context>

<pallas_src>
import functools

import jax
import jax.numpy as jnp
import numpy as np
from jax.experimental import pallas as pl
from jax.experimental.pallas import tpu as pltpu

_VMEM = pl.BlockSpec(memory_space=pltpu.MemorySpace.VMEM)


def _round_up(x, m):
    return -(-x // m) * m


# ------------------------------- fused Pallas kernel ------------------------------- #

def _make_drnn_kernel(B, T, h_dim, out_pad, dilations):
    """Build the fused DRNN+Linear kernel for static (B, T, dilations)."""
    n_layers = len(dilations)
    H = h_dim
    rows_valid = T * B                                   # valid (non-padded) time-major rows
    rows_max = _round_up(T, max(dilations)) * B          # worst-case padded rows over layers

    def kernel(*refs):
        it = iter(refs)
        x_ref = next(it)                                            # (roundup(T,d0)*B, in_dim)
        layer_refs = [tuple(next(it) for _ in range(5)) for _ in range(n_layers)]
        out_w_ref = next(it)                                        # (H, out_pad)  lane-dense
        out_b_ref = next(it)                                        # (1, out_pad)
        y_ref = next(it)                                            # (T*B, out_pad)
        state_refs = [(next(it), next(it)) for _ in range(n_layers)]
        hs_scr = next(it)                                           # (rows_max, H)   VMEM scratch
        xp_scr = next(it)                                           # (rows_max, 4H)  VMEM scratch

        # Zero the padded-time rows of the hidden-state scratch ONCE (the reference zero-pads
        # every layer's input past n_steps); valid rows are overwritten per step below.
        if rows_max > rows_valid:
            hs_scr[rows_valid:, :] = jnp.zeros((rows_max - rows_valid, H), jnp.float32)

        for l, d in enumerate(dilations):
            w_ih_ref, w_hh_ref, b_ref, h0_ref, c0_ref = layer_refs[l]
            S = d * B                                               # parallel LSTM streams
            T_d = -(-T // d)                                        # ceil(T / d)
            rows_l = T_d * S                                        # this layer's padded rows

            # Hoisted input projection + fused bias: ONE big MXU matmul for all time steps,
            # landed in VMEM scratch (nothing big stays live in vregs across the loop).
            src = x_ref if l == 0 else hs_scr
            xp_scr[:rows_l, :] = (
                jnp.dot(src[:rows_l, :], w_ih_ref[...],
                        preferred_element_type=jnp.float32) + b_ref[...])

            w_hh = w_hh_ref[...]                                    # hoisted recurrent weight
            h = h0_ref[...]                                         # (S, H) carried as values
            c = c0_ref[...]
            for t in range(T_d):                                    # static unroll (small T)
                # Rows t*S:(t+1)*S are exactly the d dilated streams at step t (order j*B+b).
                gates = xp_scr[t * S:(t + 1) * S, :] + jnp.dot(
                    h, w_hh, preferred_element_type=jnp.float32)    # (S, 4H), order [i,f,o,g]
                ifo = jax.nn.sigmoid(gates[:, :3 * H])              # one wide sigmoid
                g_g = jnp.tanh(gates[:, 3 * H:])                    # one tanh
                c = ifo[:, H:2 * H] * c + ifo[:, :H] * g_g
                h = ifo[:, 2 * H:] * jnp.tanh(c)
                # Interleave-back == contiguous row-slice store of the valid rows of step t.
                row0 = t * S
                nvalid = min((t + 1) * S, rows_valid) - row0
                if nvalid > 0:
                    hs_scr[row0:row0 + nvalid, :] = h[:nvalid, :]

            hT_ref, cT_ref = state_refs[l]
            hT_ref[...] = h                                         # state written once (aliased)
            cT_ref[...] = c

        # Fused, lane-dense output projection (nn.Linear): 128-lane wide -> unmasked stores.
        y_ref[...] = (jnp.dot(hs_scr[:rows_valid, :], out_w_ref[...],
                              preferred_element_type=jnp.float32) + out_b_ref[...])

    return kernel


@functools.partial(jax.jit, static_argnames=("dilations", "h_dim", "out_dim"))
def dilated_rnn_forward(params, X, hidden, *, dilations, h_dim, out_dim):
    """Full DilatedRNN forward as one pallas_call. Returns (y_hat, new_h)."""
    B, T, in_dim = X.shape
    n_layers = len(dilations)
    out_pad = max(128, _round_up(out_dim, 128))
    rows_max = _round_up(T, max(dilations)) * B

    # Flat time-major input, row ordering tau*B + b, zero-padded in time for layer 0 (d0 is
    # normally 1, so this is usually a no-op).
    T0 = _round_up(T, dilations[0])
    x_tm = jnp.transpose(X, (1, 0, 2)).reshape(T * B, in_dim)
    if T0 > T:
        x_tm = jnp.concatenate(
            [x_tm, jnp.zeros(((T0 - T) * B, in_dim), x_tm.dtype)], axis=0)

    inputs = [x_tm]
    for l, d in enumerate(dilations):
        cell = params["cells"][l]
        if hidden is None:
            h0 = jnp.zeros((B * d, h_dim), jnp.float32)
            c0 = jnp.zeros((B * d, h_dim), jnp.float32)
        else:
            h0 = hidden[l][0].reshape(B * d, h_dim)
            c0 = hidden[l][1].reshape(B * d, h_dim)
        inputs += [cell["w_ih"], cell["w_hh"], cell["b"], h0, c0]
    inputs += [params["out_w"], params["out_b"]]

    out_shapes = [jax.ShapeDtypeStruct((T * B, out_pad), jnp.float32)]
    for d in dilations:
        out_shapes += [jax.ShapeDtypeStruct((B * d, h_dim), jnp.float32)] * 2

    # Alias h0/c0 inputs to hT/cT outputs (no extra state buffers).
    io_aliases = {4 + 5 * l: 1 + 2 * l for l in range(n_layers)}
    io_aliases.update({5 + 5 * l: 2 + 2 * l for l in range(n_layers)})

    outs = pl.pallas_call(
        _make_drnn_kernel(B, T, h_dim, out_pad, dilations),
        out_shape=tuple(out_shapes),
        in_specs=[_VMEM] * len(inputs),
        out_specs=tuple([_VMEM] * len(out_shapes)),
        scratch_shapes=[
            pltpu.VMEM((rows_max, h_dim), jnp.float32),       # hidden-state slab (layer I/O)
            pltpu.VMEM((rows_max, 4 * h_dim), jnp.float32),   # hoisted gate pre-activations
        ],
        input_output_aliases=io_aliases,
    )(*inputs)

    y = jnp.transpose(outs[0][:, :out_dim].reshape(T, B, out_dim), (1, 0, 2))
    new_h = [(outs[1 + 2 * l][None], outs[2 + 2 * l][None]) for l in range(n_layers)]
    return y, new_h


# ------------------------------ parameters (PyTorch layout) ------------------------------ #

def init_torch_params(key, in_dim, h_dim, out_dim, n_layers):
    """nn.LSTM / nn.Linear style params: w_ih (4H,D), w_hh (4H,H), gate order [i,f,g,o]."""
    bound = 1.0 / np.sqrt(h_dim)
    dims = [in_dim] + [h_dim] * (n_layers - 1)
    cells = []
    for d_in in dims:
        key, k1, k2, k3, k4 = jax.random.split(key, 5)
        cells.append({
            "w_ih": jax.random.uniform(k1, (4 * h_dim, d_in), jnp.float32, -bound, bound),
            "w_hh": jax.random.uniform(k2, (4 * h_dim, h_dim), jnp.float32, -bound, bound),
            "b_ih": jax.random.uniform(k3, (4 * h_dim,), jnp.float32, -bound, bound),
            "b_hh": jax.random.uniform(k4, (4 * h_dim,), jnp.float32, -bound, bound),
        })
    key, k1, k2 = jax.random.split(key, 3)
    return {"cells": cells,
            "out_w": jax.random.uniform(k1, (out_dim, h_dim), jnp.float32, -bound, bound),
            "out_b": jax.random.uniform(k2, (out_dim,), jnp.float32, -bound, bound)}


def prep_kernel_params(tp, h_dim, out_dim):
    """Kernel layout: transposed (D,4H)/(H,4H) weights, fused bias, gate columns permuted from
    PyTorch [i,f,g,o] to [i,f,o,g], and the Linear head zero-padded to a lane-dense 128-wide slab."""
    H = h_dim
    out_pad = max(128, _round_up(out_dim, 128))
    perm = np.concatenate([np.arange(0, 2 * H), np.arange(3 * H, 4 * H),
                           np.arange(2 * H, 3 * H)])
    cells = []
    for c in tp["cells"]:
        cells.append({
            "w_ih": jnp.transpose(c["w_ih"][perm, :]),               # (D, 4H)
            "w_hh": jnp.transpose(c["w_hh"][perm, :]),               # (H, 4H)
            "b": (c["b_ih"] + c["b_hh"])[perm].reshape(1, 4 * H),    # (1, 4H)
        })
    out_w = jnp.zeros((H, out_pad), jnp.float32).at[:, :out_dim].set(jnp.transpose(tp["out_w"]))
    out_b = jnp.zeros((1, out_pad), jnp.float32).at[0, :out_dim].set(tp["out_b"])
    return {"cells": cells, "out_w": out_w, "out_b": out_b}


# ------------------------------- pure-JAX reference ------------------------------- #

def _lstm_layer_ref(x_btd, w_ih, w_hh, b_ih, b_hh, h0, c0):
    H = w_hh.shape[1]
    wi, wh = jnp.transpose(w_ih), jnp.transpose(w_hh)
    b = (b_ih + b_hh)[None, :]

    def step(carry, x_t):
        h, c = carry
        g = x_t @ wi + h @ wh + b
        i = jax.nn.sigmoid(g[:, 0:H])
        f = jax.nn.sigmoid(g[:, H:2 * H])
        gg = jnp.tanh(g[:, 2 * H:3 * H])
        o = jax.nn.sigmoid(g[:, 3 * H:4 * H])
        c = f * c + i * gg
        h = o * jnp.tanh(c)
        return (h, c), h

    (hT, cT), out = jax.lax.scan(step, (h0, c0), jnp.transpose(x_btd, (1, 0, 2)))
    return jnp.transpose(out, (1, 0, 2)), hT, cT


def dilated_rnn_forward_ref(tp, dilations, h_dim, out_dim, X, hidden=None):
    B, n_steps, _ = X.shape
    h_states = X
    new_h = []
    for i, (cell, d) in enumerate(zip(tp["cells"], dilations)):
        if n_steps % d != 0:
            T_d = n_steps // d + 1
            pad = T_d * d - h_states.shape[1]
            h_states = jnp.concatenate(
                [h_states, jnp.zeros((B, pad, h_states.shape[2]), h_states.dtype)], axis=1)
        dilated = jnp.concatenate([h_states[:, j::d, :] for j in range(d)], axis=0)
        if hidden is None:
            h0 = jnp.zeros((B * d, h_dim), jnp.float32)
            c0 = jnp.zeros((B * d, h_dim), jnp.float32)
        else:
            h0, c0 = hidden[i][0][0], hidden[i][1][0]
        out, hT, cT = _lstm_layer_ref(dilated, cell["w_ih"], cell["w_hh"],
                                      cell["b_ih"], cell["b_hh"], h0, c0)
        new_h.append((hT[None], cT[None]))
        bs = out.shape[0] // d
        T_d2 = out.shape[1]
        # TODO(synk): the PyTorch reference's `.view()` on a non-contiguous transpose only holds
        # for batch==1; we implement the intended dilated interleave (same as the kernel).
        splitted = (out.reshape(d, bs, T_d2, h_dim)
                       .transpose(1, 2, 0, 3)
                       .reshape(bs, T_d2 * d, h_dim))
        h_states = splitted[:, :n_steps, :]
    y = (h_states.reshape(B * n_steps, h_dim) @ jnp.transpose(tp["out_w"])
         + tp["out_b"][None, :])
    return y.reshape(B, n_steps, out_dim), new_h


# ----------------------------------------- main ----------------------------------------- #

if __name__ == "__main__":
    in_dim, h_dim, out_dim, n_layers = 4, 32, 3, 3
    batch, seq = 2, 8
    dilations = tuple(2 ** i for i in range(n_layers))

    key = jax.random.PRNGKey(0)
    pkey, xkey, x2key = jax.random.split(key, 3)
    torch_params = init_torch_params(pkey, in_dim, h_dim, out_dim, n_layers)
    kparams = prep_kernel_params(torch_params, h_dim, out_dim)
    X = jax.random.normal(xkey, (batch, seq, in_dim), jnp.float32)

    # --- step 1: hidden=None (zero-initialized LSTM states, as in the module) ---
    y_hat, new_h = dilated_rnn_forward(kparams, X, None,
                                       dilations=dilations, h_dim=h_dim, out_dim=out_dim)
    y_hat = jax.block_until_ready(y_hat)
    jax.block_until_ready(new_h)

    y_ref, new_h_ref = dilated_rnn_forward_ref(torch_params, dilations, h_dim, out_dim, X, None)
    np.testing.assert_allclose(np.asarray(y_hat), np.asarray(y_ref), rtol=1e-3, atol=1e-3)
    for (hp, cp), (hr, cr) in zip(new_h, new_h_ref):
        np.testing.assert_allclose(np.asarray(hp), np.asarray(hr), rtol=1e-3, atol=1e-3)
        np.testing.assert_allclose(np.asarray(cp), np.asarray(cr), rtol=1e-3, atol=1e-3)

    # --- step 2 of a rollout: feed the returned hidden state back in ---
    X2 = jax.random.normal(x2key, (batch, seq, in_dim), jnp.float32)
    y2, _ = dilated_rnn_forward(kparams, X2, new_h,
                                dilations=dilations, h_dim=h_dim, out_dim=out_dim)
    y2 = jax.block_until_ready(y2)
    y2_ref, _ = dilated_rnn_forward_ref(torch_params, dilations, h_dim, out_dim, X2, new_h_ref)
    np.testing.assert_allclose(np.asarray(y2), np.asarray(y2_ref), rtol=2e-3, atol=2e-3)

    assert y_hat.shape == (batch, seq, out_dim)
    print("KERNEL_OK")
</pallas_src>

<mosaic_0001>
module attributes {stable_mosaic.version = 11 : i64} {
  func.func @kernel(%arg0: memref<16x4xf32, #tpu.memory_space<vmem>>, %arg1: memref<4x128xf32, #tpu.memory_space<vmem>>, %arg2: memref<32x128xf32, #tpu.memory_space<vmem>>, %arg3: memref<1x128xf32, #tpu.memory_space<vmem>>, %arg4: memref<2x32xf32, #tpu.memory_space<vmem>>, %arg5: memref<2x32xf32, #tpu.memory_space<vmem>>, %arg6: memref<32x128xf32, #tpu.memory_space<vmem>>, %arg7: memref<32x128xf32, #tpu.memory_space<vmem>>, %arg8: memref<1x128xf32, #tpu.memory_space<vmem>>, %arg9: memref<4x32xf32, #tpu.memory_space<vmem>>, %arg10: memref<4x32xf32, #tpu.memory_space<vmem>>, %arg11: memref<32x128xf32, #tpu.memory_space<vmem>>, %arg12: memref<32x128xf32, #tpu.memory_space<vmem>>, %arg13: memref<1x128xf32, #tpu.memory_space<vmem>>, %arg14: memref<8x32xf32, #tpu.memory_space<vmem>>, %arg15: memref<8x32xf32, #tpu.memory_space<vmem>>, %arg16: memref<32x128xf32, #tpu.memory_space<vmem>>, %arg17: memref<1x128xf32, #tpu.memory_space<vmem>>, %arg18: memref<16x128xf32, #tpu.memory_space<vmem>>, %arg19: memref<2x32xf32, #tpu.memory_space<vmem>>, %arg20: memref<2x32xf32, #tpu.memory_space<vmem>>, %arg21: memref<4x32xf32, #tpu.memory_space<vmem>>, %arg22: memref<4x32xf32, #tpu.memory_space<vmem>>, %arg23: memref<8x32xf32, #tpu.memory_space<vmem>>, %arg24: memref<8x32xf32, #tpu.memory_space<vmem>>, %arg25: memref<16x32xf32, #tpu.memory_space<vmem>>, %arg26: memref<16x128xf32, #tpu.memory_space<vmem>>) attributes {dimension_semantics = [], scalar_prefetch = 0 : i64, scratch_operands = 2 : i64, tpu.core_type = #tpu.core_type<tc>} {
    %c0 = arith.constant 0 : index
    %c0_0 = arith.constant 0 : index
    %0 = vector.load %arg0[%c0, %c0_0] : memref<16x4xf32, #tpu.memory_space<vmem>>, vector<16x4xf32>
    %c0_1 = arith.constant 0 : index
    %c0_2 = arith.constant 0 : index
    %1 = vector.load %arg1[%c0_1, %c0_2] : memref<4x128xf32, #tpu.memory_space<vmem>>, vector<4x128xf32>
    %cst = arith.constant dense<0.000000e+00> : vector<16x128xf32>
    %2 = tpu.matmul %0, %1, %cst {dimension_numbers = #tpu.dot_dimension_numbers<[1], [0], [0], [1], [0, 0, 1, 1], [], []>} : vector<16x4xf32>, vector<4x128xf32>, vector<16x128xf32> -> vector<16x128xf32>
    %c0_3 = arith.constant 0 : index
    %c0_4 = arith.constant 0 : index
    %3 = vector.load %arg3[%c0_3, %c0_4] : memref<1x128xf32, #tpu.memory_space<vmem>>, vector<1x128xf32>
    %4 = vector.broadcast %3 : vector<1x128xf32> to vector<16x128xf32>
    %5 = arith.addf %2, %4 : vector<16x128xf32>
    %c0_5 = arith.constant 0 : index
    %c0_6 = arith.constant 0 : index
    %6 = vector.load %arg26[%c0_5, %c0_6] : memref<16x128xf32, #tpu.memory_space<vmem>>, vector<16x128xf32>
    tpu.vector_store %arg26[%c0_5, %c0_6], %5 {strides = array<i32>} : memref<16x128xf32, #tpu.memory_space<vmem>>, vector<16x128xf32>,
    %c0_7 = arith.constant 0 : index
    %c0_8 = arith.constant 0 : index
    %7 = vector.load %arg2[%c0_7, %c0_8] : memref<32x128xf32, #tpu.memory_space<vmem>>, vector<32x128xf32>
    %c0_9 = arith.constant 0 : index
    %c0_10 = arith.constant 0 : index
    %8 = vector.load %arg4[%c0_9, %c0_10] : memref<2x32xf32, #tpu.memory_space<vmem>>, vector<2x32xf32>
    %c0_11 = arith.constant 0 : index
    %c0_12 = arith.constant 0 : index
    %9 = vector.load %arg5[%c0_11, %c0_12] : memref<2x32xf32, #tpu.memory_space<vmem>>, vector<2x32xf32>
    %c0_13 = arith.constant 0 : index
    %c0_14 = arith.constant 0 : index
    %10 = vector.load %arg26[%c0_13, %c0_14] : memref<16x128xf32, #tpu.memory_space<vmem>>, vector<2x128xf32>
    %cst_15 = arith.constant dense<0.000000e+00> : vector<2x128xf32>
    %11 = tpu.matmul %8, %7, %cst_15 {dimension_numbers = #tpu.dot_dimension_numbers<[1], [0], [0], [1], [0, 0, 1, 1], [], []>} : vector<2x32xf32>, vector<32x128xf32>, vector<2x128xf32> -> vector<2x128xf32>
    %12 = arith.addf %10, %11 : vector<2x128xf32>
    %13 = vector.extract_strided_slice %12 {offsets = [0, 0], sizes = [2, 96], strides = [1, 1]} : vector<2x128xf32> to vector<2x96xf32>
    %14 = arith.negf %13 : vector<2x96xf32>
    %15 = math.exp %14 : vector<2x96xf32>
    %cst_16 = arith.constant 1.000000e+00 : f32
    %16 = vector.broadcast %cst_16 : f32 to vector<2x96xf32>
    %17 = arith.addf %16, %15 : vector<2x96xf32>
    %18 = arith.divf %16, %17 : vector<2x96xf32>
    %19 = vector.extract_strided_slice %12 {offsets = [0, 96], sizes = [2, 32], strides = [1, 1]} : vector<2x128xf32> to vector<2x32xf32>
    %20 = math.tanh %19 : vector<2x32xf32>
    %21 = vector.extract_strided_slice %18 {offsets = [0, 32], sizes = [2, 32], strides = [1, 1]} : vector<2x96xf32> to vector<2x32xf32>
    %22 = arith.mulf %21, %9 : vector<2x32xf32>
    %23 = vector.extract_strided_slice %18 {offsets = [0, 0], sizes = [2, 32], strides = [1, 1]} : vector<2x96xf32> to vector<2x32xf32>
    %24 = arith.mulf %23, %20 : vector<2x32xf32>
    %25 = arith.addf %22, %24 : vector<2x32xf32>
    %26 = vector.extract_strided_slice %18 {offsets = [0, 64], sizes = [2, 32], strides = [1, 1]} : vector<2x96xf32> to vector<2x32xf32>
    %27 = math.tanh %25 : vector<2x32xf32>
    %28 = arith.mulf %26, %27 : vector<2x32xf32>
    %c0_17 = arith.constant 0 : index
    %c0_18 = arith.constant 0 : index
    %29 = vector.load %arg25[%c0_17, %c0_18] : memref<16x32xf32, #tpu.memory_space<vmem>>, vector<2x32xf32>
    tpu.vector_store %arg25[%c0_17, %c0_18], %28 {strides = array<i32>} : memref<16x32xf32, #tpu.memory_space<vmem>>, vector<2x32xf32>,
    %c2 = arith.constant 2 : index
    %c0_19 = arith.constant 0 : index
    %30 = vector.load %arg26[%c2, %c0_19] : memref<16x128xf32, #tpu.memory_space<vmem>>, vector<2x128xf32>
    %cst_20 = arith.constant dense<0.000000e+00> : vector<2x128xf32>
    %31 = tpu.matmul %28, %7, %cst_20 {dimension_numbers = #tpu.dot_dimension_numbers<[1], [0], [0], [1], [0, 0, 1, 1], [], []>} : vector<2x32xf32>, vector<32x128xf32>, vector<2x128xf32> -> vector<2x128xf32>
    %32 = arith.addf %30, %31 : vector<2x128xf32>
    %33 = vector.extract_strided_slice %32 {offsets = [0, 0], sizes = [2, 96], strides = [1, 1]} : vector<2x128xf32> to vector<2x96xf32>
    %34 = arith.negf %33 : vector<2x96xf32>
    %35 = math.exp %34 : vector<2x96xf32>
    %cst_21 = arith.constant 1.000000e+00 : f32
    %36 = vector.broadcast %cst_21 : f32 to vector<2x96xf32>
    %37 = arith.addf %36, %35 : vector<2x96xf32>
    %38 = arith.divf %36, %37 : vector<2x96xf32>
    %39 = vector.extract_strided_slice %32 {offsets = [0, 96], sizes = [2, 32], strides = [1, 1]} : vector<2x128xf32> to vector<2x32xf32>
    %40 = math.tanh %39 : vector<2x32xf32>
    %41 = vector.extract_strided_slice %38 {offsets = [0, 32], sizes = [2, 32], strides = [1, 1]} : vector<2x96xf32> to vector<2x32xf32>
    %42 = arith.mulf %41, %25 : vector<2x32xf32>
    %43 = vector.extract_strided_slice %38 {offsets = [0, 0], sizes = [2, 32], strides = [1, 1]} : vector<2x96xf32> to vector<2x32xf32>
    %44 = arith.mulf %43, %40 : vector<2x32xf32>
    %45 = arith.addf %42, %44 : vector<2x32xf32>
    %46 = vector.extract_strided_slice %38 {offsets = [0, 64], sizes = [2, 32], strides = [1, 1]} : vector<2x96xf32> to vector<2x32xf32>
    %47 = math.tanh %45 : vector<2x32xf32>
    %48 = arith.mulf %46, %47 : vector<2x32xf32>
    %c2_22 = arith.constant 2 : index
    %c0_23 = arith.constant 0 : index
    %49 = vector.load %arg25[%c2_22, %c0_23] : memref<16x32xf32, #tpu.memory_space<vmem>>, vector<2x32xf32>
    tpu.vector_store %arg25[%c2_22, %c0_23], %48 {strides = array<i32>} : memref<16x32xf32, #tpu.memory_space<vmem>>, vector<2x32xf32>,
    %c4 = arith.constant 4 : index
    %c0_24 = arith.constant 0 : index
    %50 = vector.load %arg26[%c4, %c0_24] : memref<16x128xf32, #tpu.memory_space<vmem>>, vector<2x128xf32>
    %cst_25 = arith.constant dense<0.000000e+00> : vector<2x128xf32>
    %51 = tpu.matmul %48, %7, %cst_25 {dimension_numbers = #tpu.dot_dimension_numbers<[1], [0], [0], [1], [0, 0, 1, 1], [], []>} : vector<2x32xf32>, vector<32x128xf32>, vector<2x128xf32> -> vector<2x128xf32>
    %52 = arith.addf %50, %51 : vector<2x128xf32>
    %53 = vector.extract_strided_slice %52 {offsets = [0, 0], sizes = [2, 96], strides = [1, 1]} : vector<2x128xf32> to vector<2x96xf32>
    %54 = arith.negf %53 : vector<2x96xf32>
    %55 = math.exp %54 : vector<2x96xf32>
    %cst_26 = arith.constant 1.000000e+00 : f32
    %56 = vector.broadcast %cst_26 : f32 to vector<2x96xf32>
    %57 = arith.addf %56, %55 : vector<2x96xf32>
    %58 = arith.divf %56, %57 : vector<2x96xf32>
    %59 = vector.extract_strided_slice %52 {offsets = [0, 96], sizes = [2, 32], strides = [1, 1]} : vector<2x128xf32> to vector<2x32xf32>
    %60 = math.tanh %59 : vector<2x32xf32>
    %61 = vector.extract_strided_slice %58 {offsets = [0, 32], sizes = [2, 32], strides = [1, 1]} : vector<2x96xf32> to vector<2x32xf32>
    %62 = arith.mulf %61, %45 : vector<2x32xf32>
    %63 = vector.extract_strided_slice %58 {offsets = [0, 0], sizes = [2, 32], strides = [1, 1]} : vector<2x96xf32> to vector<2x32xf32>
    %64 = arith.mulf %63, %60 : vector<2x32xf32>
    %65 = arith.addf %62, %64 : vector<2x32xf32>
    %66 = vector.extract_strided_slice %58 {offsets = [0, 64], sizes = [2, 32], strides = [1, 1]} : vector<2x96xf32> to vector<2x32xf32>
    %67 = math.tanh %65 : vector<2x32xf32>
    %68 = arith.mulf %66, %67 : vector<2x32xf32>
    %c4_27 = arith.constant 4 : index
    %c0_28 = arith.constant 0 : index
    %69 = vector.load %arg25[%c4_27, %c0_28] : memref<16x32xf32, #tpu.memory_space<vmem>>, vector<2x32xf32>
    tpu.vector_store %arg25[%c4_27, %c0_28], %68 {strides = array<i32>} : memref<16x32xf32, #tpu.memory_space<vmem>>, vector<2x32xf32>,
    %c6 = arith.constant 6 : index
    %c0_29 = arith.constant 0 : index
    %70 = vector.load %arg26[%c6, %c0_29] : memref<16x128xf32, #tpu.memory_space<vmem>>, vector<2x128xf32>
    %cst_30 = arith.constant dense<0.000000e+00> : vector<2x128xf32>
    %71 = tpu.matmul %68, %7, %cst_30 {dimension_numbers = #tpu.dot_dimension_numbers<[1], [0], [0], [1], [0, 0, 1, 1], [], []>} : vector<2x32xf32>, vector<32x128xf32>, vector<2x128xf32> -> vector<2x128xf32>
    %72 = arith.addf %70, %71 : vector<2x128xf32>
    %73 = vector.extract_strided_slice %72 {offsets = [0, 0], sizes = [2, 96], strides = [1, 1]} : vector<2x128xf32> to vector<2x96xf32>
    %74 = arith.negf %73 : vector<2x96xf32>
    %75 = math.exp %74 : vector<2x96xf32>
    %cst_31 = arith.constant 1.000000e+00 : f32
    %76 = vector.broadcast %cst_31 : f32 to vector<2x96xf32>
    %77 = arith.addf %76, %75 : vector<2x96xf32>
    %78 = arith.divf %76, %77 : vector<2x96xf32>
    %79 = vector.extract_strided_slice %72 {offsets = [0, 96], sizes = [2, 32], strides = [1, 1]} : vector<2x128xf32> to vector<2x32xf32>
    %80 = math.tanh %79 : vector<2x32xf32>
    %81 = vector.extract_strided_slice %78 {offsets = [0, 32], sizes = [2, 32], strides = [1, 1]} : vector<2x96xf32> to vector<2x32xf32>
    %82 = arith.mulf %81, %65 : vector<2x32xf32>
    %83 = vector.extract_strided_slice %78 {offsets = [0, 0], sizes = [2, 32], strides = [1, 1]} : vector<2x96xf32> to vector<2x32xf32>
    %84 = arith.mulf %83, %80 : vector<2x32xf32>
    %85 = arith.addf %82, %84 : vector<2x32xf32>
    %86 = vector.extract_strided_slice %78 {offsets = [0, 64], sizes = [2, 32], strides = [1, 1]} : vector<2x96xf32> to vector<2x32xf32>
    %87 = math.tanh %85 : vector<2x32xf32>
    %88 = arith.mulf %86, %87 : vector<2x32xf32>
    %c6_32 = arith.constant 6 : index
    %c0_33 = arith.constant 0 : index
    %89 = vector.load %arg25[%c6_32, %c0_33] : memref<16x32xf32, #tpu.memory_space<vmem>>, vector<2x32xf32>
    tpu.vector_store %arg25[%c6_32, %c0_33], %88 {strides = array<i32>} : memref<16x32xf32, #tpu.memory_space<vmem>>, vector<2x32xf32>,
    %c8 = arith.constant 8 : index
    %c0_34 = arith.constant 0 : index
    %90 = vector.load %arg26[%c8, %c0_34] : memref<16x128xf32, #tpu.memory_space<vmem>>, vector<2x128xf32>
    %cst_35 = arith.constant dense<0.000000e+00> : vector<2x128xf32>
    %91 = tpu.matmul %88, %7, %cst_35 {dimension_numbers = #tpu.dot_dimension_numbers<[1], [0], [0], [1], [0, 0, 1, 1], [], []>} : vector<2x32xf32>, vector<32x128xf32>, vector<2x128xf32> -> vector<2x128xf32>
    %92 = arith.addf %90, %91 : vector<2x128xf32>
    %93 = vector.extract_strided_slice %92 {offsets = [0, 0], sizes = [2, 96], strides = [1, 1]} : vector<2x128xf32> to vector<2x96xf32>
    %94 = arith.negf %93 : vector<2x96xf32>
    %95 = math.exp %94 : vector<2x96xf32>
    %cst_36 = arith.constant 1.000000e+00 : f32
    %96 = vector.broadcast %cst_36 : f32 to vector<2x96xf32>
    %97 = arith.addf %96, %95 : vector<2x96xf32>
    %98 = arith.divf %96, %97 : vector<2x96xf32>
    %99 = vector.extract_strided_slice %92 {offsets = [0, 96], sizes = [2, 32], strides = [1, 1]} : vector<2x128xf32> to vector<2x32xf32>
    %100 = math.tanh %99 : vector<2x32xf32>
    %101 = vector.extract_strided_slice %98 {offsets = [0, 32], sizes = [2, 32], strides = [1, 1]} : vector<2x96xf32> to vector<2x32xf32>
    %102 = arith.mulf %101, %85 : vector<2x32xf32>
    %103 = vector.extract_strided_slice %98 {offsets = [0, 0], sizes = [2, 32], strides = [1, 1]} : vector<2x96xf32> to vector<2x32xf32>
    %104 = arith.mulf %103, %100 : vector<2x32xf32>
    %105 = arith.addf %102, %104 : vector<2x32xf32>
    %106 = vector.extract_strided_slice %98 {offsets = [0, 64], sizes = [2, 32], strides = [1, 1]} : vector<2x96xf32> to vector<2x32xf32>
    %107 = math.tanh %105 : vector<2x32xf32>
    %108 = arith.mulf %106, %107 : vector<2x32xf32>
    %c8_37 = arith.constant 8 : index
    %c0_38 = arith.constant 0 : index
    %109 = vector.load %arg25[%c8_37, %c0_38] : memref<16x32xf32, #tpu.memory_space<vmem>>, vector<2x32xf32>
    tpu.vector_store %arg25[%c8_37, %c0_38], %108 {strides = array<i32>} : memref<16x32xf32, #tpu.memory_space<vmem>>, vector<2x32xf32>,
    %c10 = arith.constant 10 : index
    %c0_39 = arith.constant 0 : index
    %110 = vector.load %arg26[%c10, %c0_39] : memref<16x128xf32, #tpu.memory_space<vmem>>, vector<2x128xf32>
    %cst_40 = arith.constant dense<0.000000e+00> : vector<2x128xf32>
    %111 = tpu.matmul %108, %7, %cst_40 {dimension_numbers = #tpu.dot_dimension_numbers<[1], [0], [0], [1], [0, 0, 1, 1], [], []>} : vector<2x32xf32>, vector<32x128xf32>, vector<2x128xf32> -> vector<2x128xf32>
    %112 = arith.addf %110, %111 : vector<2x128xf32>
    %113 = vector.extract_strided_slice %112 {offsets = [0, 0], sizes = [2, 96], strides = [1, 1]} : vector<2x128xf32> to vector<2x96xf32>
    %114 = arith.negf %113 : vector<2x96xf32>
    %115 = math.exp %114 : vector<2x96xf32>
    %cst_41 = arith.constant 1.000000e+00 : f32
    %116 = vector.broadcast %cst_41 : f32 to vector<2x96xf32>
    %117 = arith.addf %116, %115 : vector<2x96xf32>
    %118 = arith.divf %116, %117 : vector<2x96xf32>
    %119 = vector.extract_strided_slice %112 {offsets = [0, 96], sizes = [2, 32], strides = [1, 1]} : vector<2x128xf32> to vector<2x32xf32>
    %120 = math.tanh %119 : vector<2x32xf32>
    %121 = vector.extract_strided_slice %118 {offsets = [0, 32], sizes = [2, 32], strides = [1, 1]} : vector<2x96xf32> to vector<2x32xf32>
    %122 = arith.mulf %121, %105 : vector<2x32xf32>
    %123 = vector.extract_strided_slice %118 {offsets = [0, 0], sizes = [2, 32], strides = [1, 1]} : vector<2x96xf32> to vector<2x32xf32>
    %124 = arith.mulf %123, %120 : vector<2x32xf32>
    %125 = arith.addf %122, %124 : vector<2x32xf32>
    %126 = vector.extract_strided_slice %118 {offsets = [0, 64], sizes = [2, 32], strides = [1, 1]} : vector<2x96xf32> to vector<2x32xf32>
    %127 = math.tanh %125 : vector<2x32xf32>
    %128 = arith.mulf %126, %127 : vector<2x32xf32>
    %c10_42 = arith.constant 10 : index
    %c0_43 = arith.constant 0 : index
    %129 = vector.load %arg25[%c10_42, %c0_43] : memref<16x32xf32, #tpu.memory_space<vmem>>, vector<2x32xf32>
    tpu.vector_store %arg25[%c10_42, %c0_43], %128 {strides = array<i32>} : memref<16x32xf32, #tpu.memory_space<vmem>>, vector<2x32xf32>,
    %c12 = arith.constant 12 : index
    %c0_44 = arith.constant 0 : index
    %130 = vector.load %arg26[%c12, %c0_44] : memref<16x128xf32, #tpu.memory_space<vmem>>, vector<2x128xf32>
    %cst_45 = arith.constant dense<0.000000e+00> : vector<2x128xf32>
    %131 = tpu.matmul %128, %7, %cst_45 {dimension_numbers = #tpu.dot_dimension_numbers<[1], [0], [0], [1], [0, 0, 1, 1], [], []>} : vector<2x32xf32>, vector<32x128xf32>, vector<2x128xf32> -> vector<2x128xf32>
    %132 = arith.addf %130, %131 : vector<2x128xf32>
    %133 = vector.extract_strided_slice %132 {offsets = [0, 0], sizes = [2, 96], strides = [1, 1]} : vector<2x128xf32> to vector<2x96xf32>
    %134 = arith.negf %133 : vector<2x96xf32>
    %135 = math.exp %134 : vector<2x96xf32>
    %cst_46 = arith.constant 1.000000e+00 : f32
    %136 = vector.broadcast %cst_46 : f32 to vector<2x96xf32>
    %137 = arith.addf %136, %135 : vector<2x96xf32>
    %138 = arith.divf %136, %137 : vector<2x96xf32>
    %139 = vector.extract_strided_slice %132 {offsets = [0, 96], sizes = [2, 32], strides = [1, 1]} : vector<2x128xf32> to vector<2x32xf32>
    %140 = math.tanh %139 : vector<2x32xf32>
    %141 = vector.extract_strided_slice %138 {offsets = [0, 32], sizes = [2, 32], strides = [1, 1]} : vector<2x96xf32> to vector<2x32xf32>
    %142 = arith.mulf %141, %125 : vector<2x32xf32>
    %143 = vector.extract_strided_slice %138 {offsets = [0, 0], sizes = [2, 32], strides = [1, 1]} : vector<2x96xf32> to vector<2x32xf32>
    %144 = arith.mulf %143, %140 : vector<2x32xf32>
    %145 = arith.addf %142, %144 : vector<2x32xf32>
    %146 = vector.extract_strided_slice %138 {offsets = [0, 64], sizes = [2, 32], strides = [1, 1]} : vector<2x96xf32> to vector<2x32xf32>
    %147 = math.tanh %145 : vector<2x32xf32>
    %148 = arith.mulf %146, %147 : vector<2x32xf32>
    %c12_47 = arith.constant 12 : index
    %c0_48 = arith.constant 0 : index
    %149 = vector.load %arg25[%c12_47, %c0_48] : memref<16x32xf32, #tpu.memory_space<vmem>>, vector<2x32xf32>
    tpu.vector_store %arg25[%c12_47, %c0_48], %148 {strides = array<i32>} : memref<16x32xf32, #tpu.memory_space<vmem>>, vector<2x32xf32>,
    %c14 = arith.constant 14 : index
    %c0_49 = arith.constant 0 : index
    %150 = vector.load %arg26[%c14, %c0_49] : memref<16x128xf32, #tpu.memory_space<vmem>>, vector<2x128xf32>
    %cst_50 = arith.constant dense<0.000000e+00> : vector<2x128xf32>
    %151 = tpu.matmul %148, %7, %cst_50 {dimension_numbers = #tpu.dot_dimension_numbers<[1], [0], [0], [1], [0, 0, 1, 1], [], []>} : vector<2x32xf32>, vector<32x128xf32>, vector<2x128xf32> -> vector<2x128xf32>
    %152 = arith.addf %150, %151 : vector<2x128xf32>
    %153 = vector.extract_strided_slice %152 {offsets = [0, 0], sizes = [2, 96], strides = [1, 1]} : vector<2x128xf32> to vector<2x96xf32>
    %154 = arith.negf %153 : vector<2x96xf32>
    %155 = math.exp %154 : vector<2x96xf32>
    %cst_51 = arith.constant 1.000000e+00 : f32
    %156 = vector.broadcast %cst_51 : f32 to vector<2x96xf32>
    %157 = arith.addf %156, %155 : vector<2x96xf32>
    %158 = arith.divf %156, %157 : vector<2x96xf32>
    %159 = vector.extract_strided_slice %152 {offsets = [0, 96], sizes = [2, 32], strides = [1, 1]} : vector<2x128xf32> to vector<2x32xf32>
    %160 = math.tanh %159 : vector<2x32xf32>
    %161 = vector.extract_strided_slice %158 {offsets = [0, 32], sizes = [2, 32], strides = [1, 1]} : vector<2x96xf32> to vector<2x32xf32>
    %162 = arith.mulf %161, %145 : vector<2x32xf32>
    %163 = vector.extract_strided_slice %158 {offsets = [0, 0], sizes = [2, 32], strides = [1, 1]} : vector<2x96xf32> to vector<2x32xf32>
    %164 = arith.mulf %163, %160 : vector<2x32xf32>
    %165 = arith.addf %162, %164 : vector<2x32xf32>
    %166 = vector.extract_strided_slice %158 {offsets = [0, 64], sizes = [2, 32], strides = [1, 1]} : vector<2x96xf32> to vector<2x32xf32>
    %167 = math.tanh %165 : vector<2x32xf32>
    %168 = arith.mulf %166, %167 : vector<2x32xf32>
    %c14_52 = arith.constant 14 : index
    %c0_53 = arith.constant 0 : index
    %169 = vector.load %arg25[%c14_52, %c0_53] : memref<16x32xf32, #tpu.memory_space<vmem>>, vector<2x32xf32>
    tpu.vector_store %arg25[%c14_52, %c0_53], %168 {strides = array<i32>} : memref<16x32xf32, #tpu.memory_space<vmem>>, vector<2x32xf32>,
    %c0_54 = arith.constant 0 : index
    %c0_55 = arith.constant 0 : index
    %170 = vector.load %arg19[%c0_54, %c0_55] : memref<2x32xf32, #tpu.memory_space<vmem>>, vector<2x32xf32>
    tpu.vector_store %arg19[%c0_54, %c0_55], %168 {strides = array<i32>} : memref<2x32xf32, #tpu.memory_space<vmem>>, vector<2x32xf32>,
    %c0_56 = arith.constant 0 : index
    %c0_57 = arith.constant 0 : index
    %171 = vector.load %arg20[%c0_56, %c0_57] : memref<2x32xf32, #tpu.memory_space<vmem>>, vector<2x32xf32>
    tpu.vector_store %arg20[%c0_56, %c0_57], %165 {strides = array<i32>} : memref<2x32xf32, #tpu.memory_space<vmem>>, vector<2x32xf32>,
    %c0_58 = arith.constant 0 : index
    %c0_59 = arith.constant 0 : index
    %172 = vector.load %arg25[%c0_58, %c0_59] : memref<16x32xf32, #tpu.memory_space<vmem>>, vector<16x32xf32>
    %c0_60 = arith.constant 0 : index
    %c0_61 = arith.constant 0 : index
    %173 = vector.load %arg6[%c0_60, %c0_61] : memref<32x128xf32, #tpu.memory_space<vmem>>, vector<32x128xf32>
    %cst_62 = arith.constant dense<0.000000e+00> : vector<16x128xf32>
    %174 = tpu.matmul %172, %173, %cst_62 {dimension_numbers = #tpu.dot_dimension_numbers<[1], [0], [0], [1], [0, 0, 1, 1], [], []>} : vector<16x32xf32>, vector<32x128xf32>, vector<16x128xf32> -> vector<16x128xf32>
    %c0_63 = arith.constant 0 : index
    %c0_64 = arith.constant 0 : index
    %175 = vector.load %arg8[%c0_63, %c0_64] : memref<1x128xf32, #tpu.memory_space<vmem>>, vector<1x128xf32>
    %176 = vector.broadcast %175 : vector<1x128xf32> to vector<16x128xf32>
    %177 = arith.addf %174, %176 : vector<16x128xf32>
    %c0_65 = arith.constant 0 : index
    %c0_66 = arith.constant 0 : index
    %178 = vector.load %arg26[%c0_65, %c0_66] : memref<16x128xf32, #tpu.memory_space<vmem>>, vector<16x128xf32>
    tpu.vector_store %arg26[%c0_65, %c0_66], %177 {strides = array<i32>} : memref<16x128xf32, #tpu.memory_space<vmem>>, vector<16x128xf32>,
    %c0_67 = arith.constant 0 : index
    %c0_68 = arith.constant 0 : index
    %179 = vector.load %arg7[%c0_67, %c0_68] : memref<32x128xf32, #tpu.memory_space<vmem>>, vector<32x128xf32>
    %c0_69 = arith.constant 0 : index
    %c0_70 = arith.constant 0 : index
    %180 = vector.load %arg9[%c0_69, %c0_70] : memref<4x32xf32, #tpu.memory_space<vmem>>, vector<4x32xf32>
    %c0_71 = arith.constant 0 : index
    %c0_72 = arith.constant 0 : index
    %181 = vector.load %arg10[%c0_71, %c0_72] : memref<4x32xf32, #tpu.memory_space<vmem>>, vector<4x32xf32>
    %c0_73 = arith.constant 0 : index
    %c0_74 = arith.constant 0 : index
    %182 = vector.load %arg26[%c0_73, %c0_74] : memref<16x128xf32, #tpu.memory_space<vmem>>, vector<4x128xf32>
    %cst_75 = arith.constant dense<0.000000e+00> : vector<4x128xf32>
    %183 = tpu.matmul %180, %179, %cst_75 {dimension_numbers = #tpu.dot_dimension_numbers<[1], [0], [0], [1], [0, 0, 1, 1], [], []>} : vector<4x32xf32>, vector<32x128xf32>, vector<4x128xf32> -> vector<4x128xf32>
    %184 = arith.addf %182, %183 : vector<4x128xf32>
    %185 = vector.extract_strided_slice %184 {offsets = [0, 0], sizes = [4, 96], strides = [1, 1]} : vector<4x128xf32> to vector<4x96xf32>
    %186 = arith.negf %185 : vector<4x96xf32>
    %187 = math.exp %186 : vector<4x96xf32>
    %cst_76 = arith.constant 1.000000e+00 : f32
    %188 = vector.broadcast %cst_76 : f32 to vector<4x96xf32>
    %189 = arith.addf %188, %187 : vector<4x96xf32>
    %190 = arith.divf %188, %189 : vector<4x96xf32>
    %191 = vector.extract_strided_slice %184 {offsets = [0, 96], sizes = [4, 32], strides = [1, 1]} : vector<4x128xf32> to vector<4x32xf32>
    %192 = math.tanh %191 : vector<4x32xf32>
    %193 = vector.extract_strided_slice %190 {offsets = [0, 32], sizes = [4, 32], strides = [1, 1]} : vector<4x96xf32> to vector<4x32xf32>
    %194 = arith.mulf %193, %181 : vector<4x32xf32>
    %195 = vector.extract_strided_slice %190 {offsets = [0, 0], sizes = [4, 32], strides = [1, 1]} : vector<4x96xf32> to vector<4x32xf32>
    %196 = arith.mulf %195, %192 : vector<4x32xf32>
    %197 = arith.addf %194, %196 : vector<4x32xf32>
    %198 = vector.extract_strided_slice %190 {offsets = [0, 64], sizes = [4, 32], strides = [1, 1]} : vector<4x96xf32> to vector<4x32xf32>
    %199 = math.tanh %197 : vector<4x32xf32>
    %200 = arith.mulf %198, %199 : vector<4x32xf32>
    %c0_77 = arith.constant 0 : index
    %c0_78 = arith.constant 0 : index
    %201 = vector.load %arg25[%c0_77, %c0_78] : memref<16x32xf32, #tpu.memory_space<vmem>>, vector<4x32xf32>
    tpu.vector_store %arg25[%c0_77, %c0_78], %200 {strides = array<i32>} : memref<16x32xf32, #tpu.memory_space<vmem>>, vector<4x32xf32>,
    %c4_79 = arith.constant 4 : index
    %c0_80 = arith.constant 0 : index
    %202 = vector.load %arg26[%c4_79, %c0_80] : memref<16x128xf32, #tpu.memory_space<vmem>>, vector<4x128xf32>
    %cst_81 = arith.constant dense<0.000000e+00> : vector<4x128xf32>
    %203 = tpu.matmul %200, %179, %cst_81 {dimension_numbers = #tpu.dot_dimension_numbers<[1], [0], [0], [1], [0, 0, 1, 1], [], []>} : vector<4x32xf32>, vector<32x128xf32>, vector<4x128xf32> -> vector<4x128xf32>
    %204 = arith.addf %202, %203 : vector<4x128xf32>
    %205 = vector.extract_strided_slice %204 {offsets = [0, 0], sizes = [4, 96], strides = [1, 1]} : vector<4x128xf32> to vector<4x96xf32>
    %206 = arith.negf %205 : vector<4x96xf32>
    %207 = math.exp %206 : vector<4x96xf32>
    %cst_82 = arith.constant 1.000000e+00 : f32
    %208 = vector.broadcast %cst_82 : f32 to vector<4x96xf32>
    %209 = arith.addf %208, %207 : vector<4x96xf32>
    %210 = arith.divf %208, %209 : vector<4x96xf32>
    %211 = vector.extract_strided_slice %204 {offsets = [0, 96], sizes = [4, 32], strides = [1, 1]} : vector<4x128xf32> to vector<4x32xf32>
    %212 = math.tanh %211 : vector<4x32xf32>
    %213 = vector.extract_strided_slice %210 {offsets = [0, 32], sizes = [4, 32], strides = [1, 1]} : vector<4x96xf32> to vector<4x32xf32>
    %214 = arith.mulf %213, %197 : vector<4x32xf32>
    %215 = vector.extract_strided_slice %210 {offsets = [0, 0], sizes = [4, 32], strides = [1, 1]} : vector<4x96xf32> to vector<4x32xf32>
    %216 = arith.mulf %215, %212 : vector<4x32xf32>
    %217 = arith.addf %214, %216 : vector<4x32xf32>
    %218 = vector.extract_strided_slice %210 {offsets = [0, 64], sizes = [4, 32], strides = [1, 1]} : vector<4x96xf32> to vector<4x32xf32>
    %219 = math.tanh %217 : vector<4x32xf32>
    %220 = arith.mulf %218, %219 : vector<4x32xf32>
    %c4_83 = arith.constant 4 : index
    %c0_84 = arith.constant 0 : index
    %221 = vector.load %arg25[%c4_83, %c0_84] : memref<16x32xf32, #tpu.memory_space<vmem>>, vector<4x32xf32>
    tpu.vector_store %arg25[%c4_83, %c0_84], %220 {strides = array<i32>} : memref<16x32xf32, #tpu.memory_space<vmem>>, vector<4x32xf32>,
    %c8_85 = arith.constant 8 : index
    %c0_86 = arith.constant 0 : index
    %222 = vector.load %arg26[%c8_85, %c0_86] : memref<16x128xf32, #tpu.memory_space<vmem>>, vector<4x128xf32>
    %cst_87 = arith.constant dense<0.000000e+00> : vector<4x128xf32>
    %223 = tpu.matmul %220, %179, %cst_87 {dimension_numbers = #tpu.dot_dimension_numbers<[1], [0], [0], [1], [0, 0, 1, 1], [], []>} : vector<4x32xf32>, vector<32x128xf32>, vector<4x128xf32> -> vector<4x128xf32>
    %224 = arith.addf %222, %223 : vector<4x128xf32>
    %225 = vector.extract_strided_slice %224 {offsets = [0, 0], sizes = [4, 96], strides = [1, 1]} : vector<4x128xf32> to vector<4x96xf32>
    %226 = arith.negf %225 : vector<4x96xf32>
    %227 = math.exp %226 : vector<4x96xf32>
    %cst_88 = arith.constant 1.000000e+00 : f32
    %228 = vector.broadcast %cst_88 : f32 to vector<4x96xf32>
    %229 = arith.addf %228, %227 : vector<4x96xf32>
    %230 = arith.divf %228, %229 : vector<4x96xf32>
    %231 = vector.extract_strided_slice %224 {offsets = [0, 96], sizes = [4, 32], strides = [1, 1]} : vector<4x128xf32> to vector<4x32xf32>
    %232 = math.tanh %231 : vector<4x32xf32>
    %233 = vector.extract_strided_slice %230 {offsets = [0, 32], sizes = [4, 32], strides = [1, 1]} : vector<4x96xf32> to vector<4x32xf32>
    %234 = arith.mulf %233, %217 : vector<4x32xf32>
    %235 = vector.extract_strided_slice %230 {offsets = [0, 0], sizes = [4, 32], strides = [1, 1]} : vector<4x96xf32> to vector<4x32xf32>
    %236 = arith.mulf %235, %232 : vector<4x32xf32>
    %237 = arith.addf %234, %236 : vector<4x32xf32>
    %238 = vector.extract_strided_slice %230 {offsets = [0, 64], sizes = [4, 32], strides = [1, 1]} : vector<4x96xf32> to vector<4x32xf32>
    %239 = math.tanh %237 : vector<4x32xf32>
    %240 = arith.mulf %238, %239 : vector<4x32xf32>
    %c8_89 = arith.constant 8 : index
    %c0_90 = arith.constant 0 : index
    %241 = vector.load %arg25[%c8_89, %c0_90] : memref<16x32xf32, #tpu.memory_space<vmem>>, vector<4x32xf32>
    tpu.vector_store %arg25[%c8_89, %c0_90], %240 {strides = array<i32>} : memref<16x32xf32, #tpu.memory_space<vmem>>, vector<4x32xf32>,
    %c12_91 = arith.constant 12 : index
    %c0_92 = arith.constant 0 : index
    %242 = vector.load %arg26[%c12_91, %c0_92] : memref<16x128xf32, #tpu.memory_space<vmem>>, vector<4x128xf32>
    %cst_93 = arith.constant dense<0.000000e+00> : vector<4x128xf32>
    %243 = tpu.matmul %240, %179, %cst_93 {dimension_numbers = #tpu.dot_dimension_numbers<[1], [0], [0], [1], [0, 0, 1, 1], [], []>} : vector<4x32xf32>, vector<32x128xf32>, vector<4x128xf32> -> vector<4x128xf32>
    %244 = arith.addf %242, %243 : vector<4x128xf32>
    %245 = vector.extract_strided_slice %244 {offsets = [0, 0], sizes = [4, 96], strides = [1, 1]} : vector<4x128xf32> to vector<4x96xf32>
    %246 = arith.negf %245 : vector<4x96xf32>
    %247 = math.exp %246 : vector<4x96xf32>
    %cst_94 = arith.constant 1.000000e+00 : f32
    %248 = vector.broadcast %cst_94 : f32 to vector<4x96xf32>
    %249 = arith.addf %248, %247 : vector<4x96xf32>
    %250 = arith.divf %248, %249 : vector<4x96xf32>
    %251 = vector.extract_strided_slice %244 {offsets = [0, 96], sizes = [4, 32], strides = [1, 1]} : vector<4x128xf32> to vector<4x32xf32>
    %252 = math.tanh %251 : vector<4x32xf32>
    %253 = vector.extract_strided_slice %250 {offsets = [0, 32], sizes = [4, 32], strides = [1, 1]} : vector<4x96xf32> to vector<4x32xf32>
    %254 = arith.mulf %253, %237 : vector<4x32xf32>
    %255 = vector.extract_strided_slice %250 {offsets = [0, 0], sizes = [4, 32], strides = [1, 1]} : vector<4x96xf32> to vector<4x32xf32>
    %256 = arith.mulf %255, %252 : vector<4x32xf32>
    %257 = arith.addf %254, %256 : vector<4x32xf32>
    %258 = vector.extract_strided_slice %250 {offsets = [0, 64], sizes = [4, 32], strides = [1, 1]} : vector<4x96xf32> to vector<4x32xf32>
    %259 = math.tanh %257 : vector<4x32xf32>
    %260 = arith.mulf %258, %259 : vector<4x32xf32>
    %c12_95 = arith.constant 12 : index
    %c0_96 = arith.constant 0 : index
    %261 = vector.load %arg25[%c12_95, %c0_96] : memref<16x32xf32, #tpu.memory_space<vmem>>, vector<4x32xf32>
    tpu.vector_store %arg25[%c12_95, %c0_96], %260 {strides = array<i32>} : memref<16x32xf32, #tpu.memory_space<vmem>>, vector<4x32xf32>,
    %c0_97 = arith.constant 0 : index
    %c0_98 = arith.constant 0 : index
    %262 = vector.load %arg21[%c0_97, %c0_98] : memref<4x32xf32, #tpu.memory_space<vmem>>, vector<4x32xf32>
    tpu.vector_store %arg21[%c0_97, %c0_98], %260 {strides = array<i32>} : memref<4x32xf32, #tpu.memory_space<vmem>>, vector<4x32xf32>,
    %c0_99 = arith.constant 0 : index
    %c0_100 = arith.constant 0 : index
    %263 = vector.load %arg22[%c0_99, %c0_100] : memref<4x32xf32, #tpu.memory_space<vmem>>, vector<4x32xf32>
    tpu.vector_store %arg22[%c0_99, %c0_100], %257 {strides = array<i32>} : memref<4x32xf32, #tpu.memory_space<vmem>>, vector<4x32xf32>,
    %c0_101 = arith.constant 0 : index
    %c0_102 = arith.constant 0 : index
    %264 = vector.load %arg25[%c0_101, %c0_102] : memref<16x32xf32, #tpu.memory_space<vmem>>, vector<16x32xf32>
    %c0_103 = arith.constant 0 : index
    %c0_104 = arith.constant 0 : index
    %265 = vector.load %arg11[%c0_103, %c0_104] : memref<32x128xf32, #tpu.memory_space<vmem>>, vector<32x128xf32>
    %cst_105 = arith.constant dense<0.000000e+00> : vector<16x128xf32>
    %266 = tpu.matmul %264, %265, %cst_105 {dimension_numbers = #tpu.dot_dimension_numbers<[1], [0], [0], [1], [0, 0, 1, 1], [], []>} : vector<16x32xf32>, vector<32x128xf32>, vector<16x128xf32> -> vector<16x128xf32>
    %c0_106 = arith.constant 0 : index
    %c0_107 = arith.constant 0 : index
    %267 = vector.load %arg13[%c0_106, %c0_107] : memref<1x128xf32, #tpu.memory_space<vmem>>, vector<1x128xf32>
    %268 = vector.broadcast %267 : vector<1x128xf32> to vector<16x128xf32>
    %269 = arith.addf %266, %268 : vector<16x128xf32>
    %c0_108 = arith.constant 0 : index
    %c0_109 = arith.constant 0 : index
    %270 = vector.load %arg26[%c0_108, %c0_109] : memref<16x128xf32, #tpu.memory_space<vmem>>, vector<16x128xf32>
    tpu.vector_store %arg26[%c0_108, %c0_109], %269 {strides = array<i32>} : memref<16x128xf32, #tpu.memory_space<vmem>>, vector<16x128xf32>,
    %c0_110 = arith.constant 0 : index
    %c0_111 = arith.constant 0 : index
    %271 = vector.load %arg12[%c0_110, %c0_111] : memref<32x128xf32, #tpu.memory_space<vmem>>, vector<32x128xf32>
    %c0_112 = arith.constant 0 : index
    %c0_113 = arith.constant 0 : index
    %272 = vector.load %arg14[%c0_112, %c0_113] : memref<8x32xf32, #tpu.memory_space<vmem>>, vector<8x32xf32>
    %c0_114 = arith.constant 0 : index
    %c0_115 = arith.constant 0 : index
    %273 = vector.load %arg15[%c0_114, %c0_115] : memref<8x32xf32, #tpu.memory_space<vmem>>, vector<8x32xf32>
    %c0_116 = arith.constant 0 : index
    %c0_117 = arith.constant 0 : index
    %274 = vector.load %arg26[%c0_116, %c0_117] : memref<16x128xf32, #tpu.memory_space<vmem>>, vector<8x128xf32>
    %cst_118 = arith.constant dense<0.000000e+00> : vector<8x128xf32>
    %275 = tpu.matmul %272, %271, %cst_118 {dimension_numbers = #tpu.dot_dimension_numbers<[1], [0], [0], [1], [0, 0, 1, 1], [], []>} : vector<8x32xf32>, vector<32x128xf32>, vector<8x128xf32> -> vector<8x128xf32>
    %276 = arith.addf %274, %275 : vector<8x128xf32>
    %277 = vector.extract_strided_slice %276 {offsets = [0, 0], sizes = [8, 96], strides = [1, 1]} : vector<8x128xf32> to vector<8x96xf32>
    %278 = arith.negf %277 : vector<8x96xf32>
    %279 = math.exp %278 : vector<8x96xf32>
    %cst_119 = arith.constant 1.000000e+00 : f32
    %280 = vector.broadcast %cst_119 : f32 to vector<8x96xf32>
    %281 = arith.addf %280, %279 : vector<8x96xf32>
    %282 = arith.divf %280, %281 : vector<8x96xf32>
    %283 = vector.extract_strided_slice %276 {offsets = [0, 96], sizes = [8, 32], strides = [1, 1]} : vector<8x128xf32> to vector<8x32xf32>
    %284 = math.tanh %283 : vector<8x32xf32>
    %285 = vector.extract_strided_slice %282 {offsets = [0, 32], sizes = [8, 32], strides = [1, 1]} : vector<8x96xf32> to vector<8x32xf32>
    %286 = arith.mulf %285, %273 : vector<8x32xf32>
    %287 = vector.extract_strided_slice %282 {offsets = [0, 0], sizes = [8, 32], strides = [1, 1]} : vector<8x96xf32> to vector<8x32xf32>
    %288 = arith.mulf %287, %284 : vector<8x32xf32>
    %289 = arith.addf %286, %288 : vector<8x32xf32>
    %290 = vector.extract_strided_slice %282 {offsets = [0, 64], sizes = [8, 32], strides = [1, 1]} : vector<8x96xf32> to vector<8x32xf32>
    %291 = math.tanh %289 : vector<8x32xf32>
    %292 = arith.mulf %290, %291 : vector<8x32xf32>
    %c0_120 = arith.constant 0 : index
    %c0_121 = arith.constant 0 : index
    %293 = vector.load %arg25[%c0_120, %c0_121] : memref<16x32xf32, #tpu.memory_space<vmem>>, vector<8x32xf32>
    tpu.vector_store %arg25[%c0_120, %c0_121], %292 {strides = array<i32>} : memref<16x32xf32, #tpu.memory_space<vmem>>, vector<8x32xf32>,
    %c8_122 = arith.constant 8 : index
    %c0_123 = arith.constant 0 : index
    %294 = vector.load %arg26[%c8_122, %c0_123] : memref<16x128xf32, #tpu.memory_space<vmem>>, vector<8x128xf32>
    %cst_124 = arith.constant dense<0.000000e+00> : vector<8x128xf32>
    %295 = tpu.matmul %292, %271, %cst_124 {dimension_numbers = #tpu.dot_dimension_numbers<[1], [0], [0], [1], [0, 0, 1, 1], [], []>} : vector<8x32xf32>, vector<32x128xf32>, vector<8x128xf32> -> vector<8x128xf32>
    %296 = arith.addf %294, %295 : vector<8x128xf32>
    %297 = vector.extract_strided_slice %296 {offsets = [0, 0], sizes = [8, 96], strides = [1, 1]} : vector<8x128xf32> to vector<8x96xf32>
    %298 = arith.negf %297 : vector<8x96xf32>
    %299 = math.exp %298 : vector<8x96xf32>
    %cst_125 = arith.constant 1.000000e+00 : f32
    %300 = vector.broadcast %cst_125 : f32 to vector<8x96xf32>
    %301 = arith.addf %300, %299 : vector<8x96xf32>
    %302 = arith.divf %300, %301 : vector<8x96xf32>
    %303 = vector.extract_strided_slice %296 {offsets = [0, 96], sizes = [8, 32], strides = [1, 1]} : vector<8x128xf32> to vector<8x32xf32>
    %304 = math.tanh %303 : vector<8x32xf32>
    %305 = vector.extract_strided_slice %302 {offsets = [0, 32], sizes = [8, 32], strides = [1, 1]} : vector<8x96xf32> to vector<8x32xf32>
    %306 = arith.mulf %305, %289 : vector<8x32xf32>
    %307 = vector.extract_strided_slice %302 {offsets = [0, 0], sizes = [8, 32], strides = [1, 1]} : vector<8x96xf32> to vector<8x32xf32>
    %308 = arith.mulf %307, %304 : vector<8x32xf32>
    %309 = arith.addf %306, %308 : vector<8x32xf32>
    %310 = vector.extract_strided_slice %302 {offsets = [0, 64], sizes = [8, 32], strides = [1, 1]} : vector<8x96xf32> to vector<8x32xf32>
    %311 = math.tanh %309 : vector<8x32xf32>
    %312 = arith.mulf %310, %311 : vector<8x32xf32>
    %c8_126 = arith.constant 8 : index
    %c0_127 = arith.constant 0 : index
    %313 = vector.load %arg25[%c8_126, %c0_127] : memref<16x32xf32, #tpu.memory_space<vmem>>, vector<8x32xf32>
    tpu.vector_store %arg25[%c8_126, %c0_127], %312 {strides = array<i32>} : memref<16x32xf32, #tpu.memory_space<vmem>>, vector<8x32xf32>,
    %c0_128 = arith.constant 0 : index
    %c0_129 = arith.constant 0 : index
    %314 = vector.load %arg23[%c0_128, %c0_129] : memref<8x32xf32, #tpu.memory_space<vmem>>, vector<8x32xf32>
    tpu.vector_store %arg23[%c0_128, %c0_129], %312 {strides = array<i32>} : memref<8x32xf32, #tpu.memory_space<vmem>>, vector<8x32xf32>,
    %c0_130 = arith.constant 0 : index
    %c0_131 = arith.constant 0 : index
    %315 = vector.load %arg24[%c0_130, %c0_131] : memref<8x32xf32, #tpu.memory_space<vmem>>, vector<8x32xf32>
    tpu.vector_store %arg24[%c0_130, %c0_131], %309 {strides = array<i32>} : memref<8x32xf32, #tpu.memory_space<vmem>>, vector<8x32xf32>,
    %c0_132 = arith.constant 0 : index
    %c0_133 = arith.constant 0 : index
    %316 = vector.load %arg25[%c0_132, %c0_133] : memref<16x32xf32, #tpu.memory_space<vmem>>, vector<16x32xf32>
    %c0_134 = arith.constant 0 : index
    %c0_135 = arith.constant 0 : index
    %317 = vector.load %arg16[%c0_134, %c0_135] : memref<32x128xf32, #tpu.memory_space<vmem>>, vector<32x128xf32>
    %cst_136 = arith.constant dense<0.000000e+00> : vector<16x128xf32>
    %318 = tpu.matmul %316, %317, %cst_136 {dimension_numbers = #tpu.dot_dimension_numbers<[1], [0], [0], [1], [0, 0, 1, 1], [], []>} : vector<16x32xf32>, vector<32x128xf32>, vector<16x128xf32> -> vector<16x128xf32>
    %c0_137 = arith.constant 0 : index
    %c0_138 = arith.constant 0 : index
    %319 = vector.load %arg17[%c0_137, %c0_138] : memref<1x128xf32, #tpu.memory_space<vmem>>, vector<1x128xf32>
    %320 = vector.broadcast %319 : vector<1x128xf32> to vector<16x128xf32>
    %321 = arith.addf %318, %320 : vector<16x128xf32>
    %c0_139 = arith.constant 0 : index
    %c0_140 = arith.constant 0 : index
    %322 = vector.load %arg18[%c0_139, %c0_140] : memref<16x128xf32, #tpu.memory_space<vmem>>, vector<16x128xf32>
    tpu.vector_store %arg18[%c0_139, %c0_140], %321 {strides = array<i32>} : memref<16x128xf32, #tpu.memory_space<vmem>>, vector<16x128xf32>,
    return
  }
}

</mosaic_0001>

<llo_original>
// kernel: dilated_rnn_forward.1
$region0: #{dilated_rnn_forward.1}
  #allocation0 [shape = 'u32[]', space=smem, size = 0x4, offset = 0x4, fixed_abs, tag = 'smem constant byte address 0x4 - core index']
  #allocation1 [shape = 'u32[72,128]{1,0:T(1,128)}', space=vmem, size = 0x9000, scoped, tag = 'internal scratch']
  #allocation2 [shape = 'f32[16,32]{1,0:T(8,128)}', space=vmem, size = 0x2000, scoped, tag = 'scratch operand']
  #allocation3 [shape = 'f32[16,128]{1,0:T(8,128)}', space=vmem, size = 0x2000, scoped, tag = 'scratch operand']
  %s0 = inlined_call_operand.vmem [shape: f32[16,4], index: 0, kind: input, shape index: {}]
  %s1 = inlined_call_operand.vmem [shape: f32[4,128], index: 1, kind: input, shape index: {}]
  %s2 = inlined_call_operand.vmem [shape: f32[32,128], index: 2, kind: input, shape index: {}]
  %s3 = inlined_call_operand.vmem [shape: f32[1,128], index: 3, kind: input, shape index: {}]
  %s4 = inlined_call_operand.vmem [shape: f32[2,32], index: 4, kind: input, shape index: {}, may-alias: {4,19}]
  %s5 = inlined_call_operand.vmem [shape: f32[2,32], index: 5, kind: input, shape index: {}, may-alias: {5,20}]
  %s6 = inlined_call_operand.hbm [shape: f32[32,128], index: 6, kind: input, shape index: {}]
  %s7 = inlined_call_operand.hbm [shape: f32[32,128], index: 7, kind: input, shape index: {}]
  %s8 = inlined_call_operand.vmem [shape: f32[1,128], index: 8, kind: input, shape index: {}]
  %s9 = inlined_call_operand.vmem [shape: f32[4,32], index: 9, kind: input, shape index: {}, may-alias: {9,21}]
  %s10 = inlined_call_operand.vmem [shape: f32[4,32], index: 10, kind: input, shape index: {}, may-alias: {10,22}]
  %s11 = inlined_call_operand.hbm [shape: f32[32,128], index: 11, kind: input, shape index: {}]
  %s12 = inlined_call_operand.hbm [shape: f32[32,128], index: 12, kind: input, shape index: {}]
  %s13 = inlined_call_operand.vmem [shape: f32[1,128], index: 13, kind: input, shape index: {}]
  %s14 = inlined_call_operand.vmem [shape: f32[8,32], index: 14, kind: input, shape index: {}, may-alias: {14,23}]
  %s15 = inlined_call_operand.vmem [shape: f32[8,32], index: 15, kind: input, shape index: {}, may-alias: {15,24}]
  %s16 = inlined_call_operand.hbm [shape: f32[32,128], index: 16, kind: input, shape index: {}]
  %s17 = inlined_call_operand.vmem [shape: f32[1,128], index: 17, kind: input, shape index: {}]
  %s18 = inlined_call_operand.vmem [shape: f32[16,128], index: 18, kind: output, shape index: {0}]
  %s19 = inlined_call_operand.vmem [shape: f32[2,32], index: 19, kind: output, shape index: {1}, may-alias: {4,19}]
  %s20 = inlined_call_operand.vmem [shape: f32[2,32], index: 20, kind: output, shape index: {2}, may-alias: {5,20}]
  %s21 = inlined_call_operand.vmem [shape: f32[4,32], index: 21, kind: output, shape index: {3}, may-alias: {9,21}]
  %s22 = inlined_call_operand.vmem [shape: f32[4,32], index: 22, kind: output, shape index: {4}, may-alias: {10,22}]
  %s23 = inlined_call_operand.vmem [shape: f32[8,32], index: 23, kind: output, shape index: {5}, may-alias: {14,23}]
  %s24 = inlined_call_operand.vmem [shape: f32[8,32], index: 24, kind: output, shape index: {6}, may-alias: {15,24}]
  %25 = xla_tuple %s18, %s19, %s20, %s21, %s22, %s23, %s24
  %s26 = sld [smem:[#allocation0]]
  $region150: #{dilated_rnn_forward.1} parent=0
    _
  %s28 = ssub.s32 1, %s26
  %s29 = scalar_select 0, %s28, %s26
  $region1: #{dilated_rnn_forward.1} parent=0
    #allocation4 [shape = 'u8[16384]{0}', space=vmem, size = 0x4000, scoped, tag = 'input window, operand 6, single buffered']
    #allocation5 [shape = 's32[1]{0}', space=sflag, size = 0x4, scoped, tag = 'scoped memory for dilated_rnn_forward.1']
    #allocation6 [shape = 'u8[16384]{0}', space=vmem, size = 0x4000, scoped, tag = 'input window, operand 7, single buffered']
    #allocation7 [shape = 's32[1]{0}', space=sflag, size = 0x4, scoped, tag = 'scoped memory for dilated_rnn_forward.1']
    #allocation8 [shape = 'u8[16384]{0}', space=vmem, size = 0x4000, scoped, tag = 'input window, operand 11, single buffered']
    #allocation9 [shape = 'u8[16384]{0}', space=vmem, size = 0x4000, scoped, tag = 'input window, operand 12, single buffered']
    #allocation10 [shape = 's32[1]{0}', space=sflag, size = 0x4, scoped, tag = 'scoped memory for dilated_rnn_forward.1']
    #allocation11 [shape = 'u8[16384]{0}', space=vmem, size = 0x4000, scoped, tag = 'input window, operand 16, single buffered']
    %30 = vsyncpa [#allocation5], 0
    %31 = vsyncpa [#allocation7], 0
    %32 = vsyncpa [#allocation10], 0
    // Predicated region
    $region2: #{dilated_rnn_forward.1} parent=1 // pred_check
      _
    $region3: #{dilated_rnn_forward.1} parent=1 // pred_check_branch
      %34 = sbr.rel (0) target = $region5
    $region4: #{dilated_rnn_forward.1} parent=1 // pred_region
      _
    $region5: #{dilated_rnn_forward.1} parent=1 // pred_fallthru
      _
    // Predicated region
    $region6: #{dilated_rnn_forward.1} parent=1 // pred_check
      _
    $region7: #{dilated_rnn_forward.1} parent=1 // pred_check_branch
      %36 = sbr.rel (0) target = $region9
    $region8: #{dilated_rnn_forward.1} parent=1 // pred_region
      _
    $region9: #{dilated_rnn_forward.1} parent=1 // pred_fallthru
      _
    // Predicated region
    $region10: #{dilated_rnn_forward.1} parent=1 // pred_check
      _
    $region11: #{dilated_rnn_forward.1} parent=1 // pred_check_branch
      %38 = sbr.rel (0) target = $region13
    $region12: #{dilated_rnn_forward.1} parent=1 // pred_region
      _
    $region13: #{dilated_rnn_forward.1} parent=1 // pred_fallthru
      _
    // Predicated region
    $region14: #{dilated_rnn_forward.1} parent=1 // pred_check
      _
    $region15: #{dilated_rnn_forward.1} parent=1 // pred_check_branch
      %40 = sbr.rel (0) target = $region17
    $region16: #{dilated_rnn_forward.1} parent=1 // pred_region
      _
    $region17: #{dilated_rnn_forward.1} parent=1 // pred_fallthru
      _
    // Predicated region
    $region18: #{dilated_rnn_forward.1} parent=1 // pred_check
      _
    $region19: #{dilated_rnn_forward.1} parent=1 // pred_check_branch
      %42 = sbr.rel (0) target = $region21
    $region20: #{dilated_rnn_forward.1} parent=1 // pred_region
      _
    $region21: #{dilated_rnn_forward.1} parent=1 // pred_fallthru
      _
    // Predicated region
    $region22: #{dilated_rnn_forward.1} parent=1 // pred_check
      _
    $region23: #{dilated_rnn_forward.1} parent=1 // pred_check_branch
      %44 = sbr.rel (0) target = $region25
    $region24: #{dilated_rnn_forward.1} parent=1 // pred_region
      _
    $region25: #{dilated_rnn_forward.1} parent=1 // pred_fallthru
      _
    // Predicated region
    $region26: #{dilated_rnn_forward.1} parent=1 // pred_check
      _
    $region27: #{dilated_rnn_forward.1} parent=1 // pred_check_branch
      %46 = sbr.rel (0) target = $region29
    $region28: #{dilated_rnn_forward.1} parent=1 // pred_region
      %48 = vsyncadd [#allocation5], 0
      %s49 = sshll.u32 %s6, 4
      %s50 = int_to_ptr.hbm [resolvable:$true] %s49
      %s51 = sshll.u32 [#allocation4], 4
      %s52 = int_to_ptr.vmem [resolvable:$true] %s51
      %57 = dma.hbm_to_vmem [thread:$0]  %s50, 512, %s52, [#allocation5], 128, 128, 8
    $region29: #{dilated_rnn_forward.1} parent=1 // pred_fallthru
      _
    // Predicated region
    $region30: #{dilated_rnn_forward.1} parent=1 // pred_check
      _
    $region31: #{dilated_rnn_forward.1} parent=1 // pred_check_branch
      %59 = sbr.rel (0) target = $region33
    $region32: #{dilated_rnn_forward.1} parent=1 // pred_region
      %61 = vsyncadd [#allocation7], 0
      %s62 = sshll.u32 %s7, 4
      %s63 = int_to_ptr.hbm [resolvable:$true] %s62
      %s64 = sshll.u32 [#allocation6], 4
      %s65 = int_to_ptr.vmem [resolvable:$true] %s64
      %70 = dma.hbm_to_vmem [thread:$0]  %s63, 512, %s65, [#allocation7], 128, 128, 8
    $region33: #{dilated_rnn_forward.1} parent=1 // pred_fallthru
      _
    // Predicated region
    $region34: #{dilated_rnn_forward.1} parent=1 // pred_check
      _
    $region35: #{dilated_rnn_forward.1} parent=1 // pred_check_branch
      %72 = sbr.rel (0) target = $region37
    $region36: #{dilated_rnn_forward.1} parent=1 // pred_region
      _
    $region37: #{dilated_rnn_forward.1} parent=1 // pred_fallthru
      _
    // Predicated region
    $region38: #{dilated_rnn_forward.1} parent=1 // pred_check
      _
    $region39: #{dilated_rnn_forward.1} parent=1 // pred_check_branch
      %74 = sbr.rel (0) target = $region41
    $region40: #{dilated_rnn_forward.1} parent=1 // pred_region
      _
    $region41: #{dilated_rnn_forward.1} parent=1 // pred_fallthru
      _
    // Predicated region
    $region42: #{dilated_rnn_forward.1} parent=1 // pred_check
      _
    $region43: #{dilated_rnn_forward.1} parent=1 // pred_check_branch
      %76 = sbr.rel (0) target = $region45
    $region44: #{dilated_rnn_forward.1} parent=1 // pred_region
      _
    $region45: #{dilated_rnn_forward.1} parent=1 // pred_fallthru
      _
    // Predicated region
    $region46: #{dilated_rnn_forward.1} parent=1 // pred_check
      _
    $region47: #{dilated_rnn_forward.1} parent=1 // pred_check_branch
      %78 = sbr.rel (0) target = $region49
    $region48: #{dilated_rnn_forward.1} parent=1 // pred_region
      %80 = vsyncadd [#allocation7], 0
      %s81 = sshll.u32 %s11, 4
      %s82 = int_to_ptr.hbm [resolvable:$true] %s81
      %s83 = sshll.u32 [#allocation8], 4
      %s84 = int_to_ptr.vmem [resolvable:$true] %s83
      %89 = dma.hbm_to_vmem [thread:$0]  %s82, 512, %s84, [#allocation7], 128, 128, 8
    $region49: #{dilated_rnn_forward.1} parent=1 // pred_fallthru
      _
    // Predicated region
    $region50: #{dilated_rnn_forward.1} parent=1 // pred_check
      _
    $region51: #{dilated_rnn_forward.1} parent=1 // pred_check_branch
      %91 = sbr.rel (0) target = $region53
    $region52: #{dilated_rnn_forward.1} parent=1 // pred_region
      %93 = vsyncadd [#allocation10], 0
      %s94 = sshll.u32 %s12, 4
      %s95 = int_to_ptr.hbm [resolvable:$true] %s94
      %s96 = sshll.u32 [#allocation9], 4
      %s97 = int_to_ptr.vmem [resolvable:$true] %s96
      %102 = dma.hbm_to_vmem [thread:$0]  %s95, 512, %s97, [#allocation10], 128, 128, 8
    $region53: #{dilated_rnn_forward.1} parent=1 // pred_fallthru
      _
    // Predicated region
    $region54: #{dilated_rnn_forward.1} parent=1 // pred_check
      _
    $region55: #{dilated_rnn_forward.1} parent=1 // pred_check_branch
      %104 = sbr.rel (0) target = $region57
    $region56: #{dilated_rnn_forward.1} parent=1 // pred_region
      _
    $region57: #{dilated_rnn_forward.1} parent=1 // pred_fallthru
      _
    // Predicated region
    $region58: #{dilated_rnn_forward.1} parent=1 // pred_check
      _
    $region59: #{dilated_rnn_forward.1} parent=1 // pred_check_branch
      %106 = sbr.rel (0) target = $region61
    $region60: #{dilated_rnn_forward.1} parent=1 // pred_region
      _
    $region61: #{dilated_rnn_forward.1} parent=1 // pred_fallthru
      _
    // Predicated region
    $region62: #{dilated_rnn_forward.1} parent=1 // pred_check
      _
    $region63: #{dilated_rnn_forward.1} parent=1 // pred_check_branch
      %108 = sbr.rel (0) target = $region65
    $region64: #{dilated_rnn_forward.1} parent=1 // pred_region
      _
    $region65: #{dilated_rnn_forward.1} parent=1 // pred_fallthru
      _
    // Predicated region
    $region66: #{dilated_rnn_forward.1} parent=1 // pred_check
      _
    $region67: #{dilated_rnn_forward.1} parent=1 // pred_check_branch
      %110 = sbr.rel (0) target = $region69
    $region68: #{dilated_rnn_forward.1} parent=1 // pred_region
      %112 = vsyncadd [#allocation10], 0
      %s113 = sshll.u32 %s16, 4
      %s114 = int_to_ptr.hbm [resolvable:$true] %s113
      %s115 = sshll.u32 [#allocation11], 4
      %s116 = int_to_ptr.vmem [resolvable:$true] %s115
      %121 = dma.hbm_to_vmem [thread:$0]  %s114, 512, %s116, [#allocation10], 128, 128, 8
    $region69: #{dilated_rnn_forward.1} parent=1 // pred_fallthru
      _
    // Predicated region
    $region70: #{dilated_rnn_forward.1} parent=1 // pred_check
      _
    $region71: #{dilated_rnn_forward.1} parent=1 // pred_check_branch
      %123 = sbr.rel (0) target = $region73
    $region72: #{dilated_rnn_forward.1} parent=1 // pred_region
      _
    $region73: #{dilated_rnn_forward.1} parent=1 // pred_fallthru
      _
    // Predicated region
    $region74: #{dilated_rnn_forward.1} parent=1 // pred_check
      _
    $region75: #{dilated_rnn_forward.1} parent=1 // pred_check_branch
      %125 = sbr.rel (0) target = $region77
    $region76: #{dilated_rnn_forward.1} parent=1 // pred_region
      %127 = dma.done [#allocation5], 512
    $region77: #{dilated_rnn_forward.1} parent=1 // pred_fallthru
      _
    // Predicated region
    $region78: #{dilated_rnn_forward.1} parent=1 // pred_check
      _
    $region79: #{dilated_rnn_forward.1} parent=1 // pred_check_branch
      %129 = sbr.rel (0) target = $region81
    $region80: #{dilated_rnn_forward.1} parent=1 // pred_region
      %131 = dma.done [#allocation7], 512
    $region81: #{dilated_rnn_forward.1} parent=1 // pred_fallthru
      _
    // Predicated region
    $region82: #{dilated_rnn_forward.1} parent=1 // pred_check
      _
    $region83: #{dilated_rnn_forward.1} parent=1 // pred_check_branch
      %133 = sbr.rel (0) target = $region85
    $region84: #{dilated_rnn_forward.1} parent=1 // pred_region
      %135 = dma.done [#allocation7], 512
    $region85: #{dilated_rnn_forward.1} parent=1 // pred_fallthru
      _
    // Predicated region
    $region86: #{dilated_rnn_forward.1} parent=1 // pred_check
      _
    $region87: #{dilated_rnn_forward.1} parent=1 // pred_check_branch
      %137 = sbr.rel (0) target = $region89
    $region88: #{dilated_rnn_forward.1} parent=1 // pred_region
      %139 = dma.done [#allocation10], 512
    $region89: #{dilated_rnn_forward.1} parent=1 // pred_fallthru
      _
    // Predicated region
    $region90: #{dilated_rnn_forward.1} parent=1 // pred_check
      _
    $region91: #{dilated_rnn_forward.1} parent=1 // pred_check_branch
      %141 = sbr.rel (0) target = $region93
    $region92: #{dilated_rnn_forward.1} parent=1 // pred_region
      %143 = dma.done [#allocation10], 512
    $region93: #{dilated_rnn_forward.1} parent=1 // pred_fallthru
      _
    %v144 = vld [vmem:[%s0] sm:$0xff]
    %v145 = vld [vmem:[%s0 + $0x8] sm:$0xff]
    %v146 = vld [vmem:[%s1] sm:$0xf]
    %v147 = vld [vmem:[%s3] sm:$0x1]
    %v149 = vperm.slane %v147, 0
    %vm151 = vcmask 31744
    %v153 = vsel %vm151, %v144, 0
    %v156 = vsel %vm151, %v145, 0
    %vm158 = vcmask 1043456
    %v160 = vsel %vm158, %v146, 0
    %162 = vmatpush.msra.mxu0 0.0
    %163 = vmatpush.msra.mxu0 0.0
    %164 = vmatpush.msra.mxu0 0.0
    %165 = vmatpush.msra.mxu0 0.0
    %166 = vmatpush.msra.mxu0 0.0
    %167 = vmatpush.msra.mxu0 0.0
    %168 = vmatpush.msra.mxu0 0.0
    %169 = vmatpush.msra.mxu0 0.0
    %170 = vmatpush.msra.mxu0 0.0
    %171 = vmatpush.msra.mxu0 0.0
    %172 = vmatpush.msra.mxu0 0.0
    %173 = vmatpush.msra.mxu0 0.0
    %174 = vmatpush.msra.mxu0 0.0
    %175 = vmatpush.msra.mxu0 0.0
    %176 = vmatpush.msra.mxu0 0.0
    %177 = vmatpush.msra.mxu0 %v160
    %178 = vmatmul.f32.gmra.mxu0 %v153
    %v179 = vpop.f32.mrf.mxu0
    %v180 = vadd.f32 %v149, %v179
    %181 = vmatmul.f32.gmra.mxu0 %v156
    %v182 = vpop.f32.mrf.mxu0
    %v183 = vadd.f32 %v149, %v182
    %184 = vdwg.mxu0
    %185 = vst [vmem:[#allocation3] sm:$0xff] %v180
    %186 = vst [vmem:[#allocation3 + $0x8] sm:$0xff] %v183
    %v187 = vld [vmem:[%s2] sm:$0xff]
    %v188 = vld [vmem:[%s2 + $0x8] sm:$0xff]
    %v189 = vld [vmem:[%s2 + $0x10] sm:$0xff]
    %v190 = vld [vmem:[%s2 + $0x18] sm:$0xff]
    %v191 = vld [vmem:[%s4] sm:$0x3]
    %v192 = vld [vmem:[%s5] sm:$0x3]
    %v193 = vld [vmem:[#allocation3] sm:$0x3]
    %vm194 = vcmask 261120
    %v196 = vsel %vm194, %v191, 0
    %198 = vmatpush.msra.mxu0 0.0
    %199 = vmatpush.msra.mxu0 0.0
    %200 = vmatpush.msra.mxu0 0.0
    %201 = vmatpush.msra.mxu0 0.0
    %202 = vmatpush.msra.mxu0 0.0
    %203 = vmatpush.msra.mxu0 0.0
    %204 = vmatpush.msra.mxu0 0.0
    %205 = vmatpush.msra.mxu0 0.0
    %206 = vmatpush.msra.mxu0 0.0
    %207 = vmatpush.msra.mxu0 0.0
    %208 = vmatpush.msra.mxu0 0.0
    %209 = vmatpush.msra.mxu0 0.0
    %210 = vmatpush.msra.mxu0 %v190
    %211 = vmatpush.msra.mxu0 %v189
    %212 = vmatpush.msra.mxu0 %v188
    %213 = vmatpush.msra.mxu0 %v187
    %214 = vmatmul.f32.gmra.mxu0 %v196
    %v215 = vpop.f32.mrf.mxu0
    %v216 = vadd.f32 0.0, %v215
    %217 = vdwg.mxu0
    %v218 = vadd.f32 %v193, %v216
    %v219 = vxor.u32 %v218, 2147483648
    %v220 = vmul.f32 %v219, 1.442695
    %v221 = vpow.pop %v220
    %v222 = vadd.f32 %v221, 1.0
    %v223 = vrcp.pop %v222
    %v224 = vmul.f32 %v222, %v223
    %v225 = vsub.f32 1.0, %v224
    %v226 = vmul.f32 %v223, %v225
    %v227 = vadd.f32 %v223, %v226
    %vm228 = vweird.f32 %v222
    %vm229 = vweird.f32 %v223
    %vm230 = vmor %vm228, %vm229
    %v231 = vsel %vm230, %v223, %v227
    %v232 = vand.u32 2147483647, %v222
    %vm233 = vcmp.eq.f32.partialorder %v232, 8.507059e+37
    %v234 = vand.u32 %v222, 2147483648
    %v235 = vor.u32 1.1754944e-38, %v234
    %v236 = vsel %vm233, %v235, %v231
    %v237 = vmul.f32 1.0, %v236
    %v238 = vtanh.pop %v218
    %240 = vrot.lane.b32.xlu0 %v192, 32
    %v241 = vpop.permute.xlu0 %240
    %v243 = vmul.f32 %v237, %v241
    %245 = vrot.lane.b32.xlu0 %v238, 32
    %v246 = vpop.permute.xlu0 %245
    %v248 = vmul.f32 %v237, %v246
    %250 = vrot.lane.b32.xlu0 %v248, 32
    %v251 = vpop.permute.xlu0 %250
    %v253 = vadd.f32 %v243, %v251
    %v254 = vtanh.pop %v253
    %256 = vrot.lane.b32.xlu0 %v254, 32
    %v257 = vpop.permute.xlu0 %256
    %v259 = vmul.f32 %v237, %v257
    %261 = vrot.lane.b32.xlu0 %v259, 64
    %v262 = vpop.permute.xlu0 %261
    %vm264 = vcmask 254976
    %265 = vst.msk [vmem:[#allocation2] sm:$0x3] %vm264, %v262
    %v266 = vld [vmem:[#allocation3 + $0x2] sm:$0x3]
    %v267 = vsel %vm194, %v262, 0
    %269 = vmatpush.msra.mxu0 0.0
    %270 = vmatpush.msra.mxu0 0.0
    %271 = vmatpush.msra.mxu0 0.0
    %272 = vmatpush.msra.mxu0 0.0
    %273 = vmatpush.msra.mxu0 0.0
    %274 = vmatpush.msra.mxu0 0.0
    %275 = vmatpush.msra.mxu0 0.0
    %276 = vmatpush.msra.mxu0 0.0
    %277 = vmatpush.msra.mxu0 0.0
    %278 = vmatpush.msra.mxu0 0.0
    %279 = vmatpush.msra.mxu0 0.0
    %280 = vmatpush.msra.mxu0 0.0
    %281 = vmatpush.msra.mxu0 %v190
    %282 = vmatpush.msra.mxu0 %v189
    %283 = vmatpush.msra.mxu0 %v188
    %284 = vmatpush.msra.mxu0 %v187
    %285 = vmatmul.f32.gmra.mxu0 %v267
    %v286 = vpop.f32.mrf.mxu0
    %v287 = vadd.f32 0.0, %v286
    %288 = vdwg.mxu0
    %v289 = vadd.f32 %v266, %v287
    %v290 = vxor.u32 %v289, 2147483648
    %v291 = vmul.f32 %v290, 1.442695
    %v292 = vpow.pop %v291
    %v293 = vadd.f32 %v292, 1.0
    %v294 = vrcp.pop %v293
    %v295 = vmul.f32 %v293, %v294
    %v296 = vsub.f32 1.0, %v295
    %v297 = vmul.f32 %v294, %v296
    %v298 = vadd.f32 %v294, %v297
    %vm299 = vweird.f32 %v293
    %vm300 = vweird.f32 %v294
    %vm301 = vmor %vm299, %vm300
    %v302 = vsel %vm301, %v294, %v298
    %v303 = vand.u32 2147483647, %v293
    %vm304 = vcmp.eq.f32.partialorder %v303, 8.507059e+37
    %v305 = vand.u32 %v293, 2147483648
    %v306 = vor.u32 1.1754944e-38, %v305
    %v307 = vsel %vm304, %v306, %v302
    %v308 = vmul.f32 1.0, %v307
    %v309 = vtanh.pop %v289
    %v310 = vmul.f32 %v308, %v253
    %312 = vrot.lane.b32.xlu0 %v309, 32
    %v313 = vpop.permute.xlu0 %312
    %v315 = vmul.f32 %v308, %v313
    %317 = vrot.lane.b32.xlu0 %v315, 32
    %v318 = vpop.permute.xlu0 %317
    %v320 = vadd.f32 %v310, %v318
    %v321 = vtanh.pop %v320
    %323 = vrot.lane.b32.xlu0 %v321, 32
    %v324 = vpop.permute.xlu0 %323
    %v326 = vmul.f32 %v308, %v324
    %328 = vrot.lane.b32.xlu0 %v326, 64
    %v329 = vpop.permute.xlu0 %328
    %331 = vst.msk [vmem:[#allocation2 + $0x2] sm:$0x3] %vm264, %v329
    %v332 = vld [vmem:[#allocation3 + $0x4] sm:$0x3]
    %v333 = vsel %vm194, %v329, 0
    %335 = vmatpush.msra.mxu0 0.0
    %336 = vmatpush.msra.mxu0 0.0
    %337 = vmatpush.msra.mxu0 0.0
    %338 = vmatpush.msra.mxu0 0.0
    %339 = vmatpush.msra.mxu0 0.0
    %340 = vmatpush.msra.mxu0 0.0
    %341 = vmatpush.msra.mxu0 0.0
    %342 = vmatpush.msra.mxu0 0.0
    %343 = vmatpush.msra.mxu0 0.0
    %344 = vmatpush.msra.mxu0 0.0
    %345 = vmatpush.msra.mxu0 0.0
    %346 = vmatpush.msra.mxu0 0.0
    %347 = vmatpush.msra.mxu0 %v190
    %348 = vmatpush.msra.mxu0 %v189
    %349 = vmatpush.msra.mxu0 %v188
    %350 = vmatpush.msra.mxu0 %v187
    %351 = vmatmul.f32.gmra.mxu0 %v333
    %v352 = vpop.f32.mrf.mxu0
    %v353 = vadd.f32 0.0, %v352
    %354 = vdwg.mxu0
    %v355 = vadd.f32 %v332, %v353
    %v356 = vxor.u32 %v355, 2147483648
    %v357 = vmul.f32 %v356, 1.442695
    %v358 = vpow.pop %v357
    %v359 = vadd.f32 %v358, 1.0
    %v360 = vrcp.pop %v359
    %v361 = vmul.f32 %v359, %v360
    %v362 = vsub.f32 1.0, %v361
    %v363 = vmul.f32 %v360, %v362
    %v364 = vadd.f32 %v360, %v363
    %vm365 = vweird.f32 %v359
    %vm366 = vweird.f32 %v360
    %vm367 = vmor %vm365, %vm366
    %v368 = vsel %vm367, %v360, %v364
    %v369 = vand.u32 2147483647, %v359
    %vm370 = vcmp.eq.f32.partialorder %v369, 8.507059e+37
    %v371 = vand.u32 %v359, 2147483648
    %v372 = vor.u32 1.1754944e-38, %v371
    %v373 = vsel %vm370, %v372, %v368
    %v374 = vmul.f32 1.0, %v373
    %v375 = vtanh.pop %v355
    %v376 = vmul.f32 %v374, %v320
    %378 = vrot.lane.b32.xlu0 %v375, 32
    %v379 = vpop.permute.xlu0 %378
    %v381 = vmul.f32 %v374, %v379
    %383 = vrot.lane.b32.xlu0 %v381, 32
    %v384 = vpop.permute.xlu0 %383
    %v386 = vadd.f32 %v376, %v384
    %v387 = vtanh.pop %v386
    %389 = vrot.lane.b32.xlu0 %v387, 32
    %v390 = vpop.permute.xlu0 %389
    %v392 = vmul.f32 %v374, %v390
    %394 = vrot.lane.b32.xlu0 %v392, 64
    %v395 = vpop.permute.xlu0 %394
    %397 = vst.msk [vmem:[#allocation2 + $0x4] sm:$0x3] %vm264, %v395
    %v398 = vld [vmem:[#allocation3 + $0x6] sm:$0x3]
    %v399 = vsel %vm194, %v395, 0
    %401 = vmatpush.msra.mxu0 0.0
    %402 = vmatpush.msra.mxu0 0.0
    %403 = vmatpush.msra.mxu0 0.0
    %404 = vmatpush.msra.mxu0 0.0
    %405 = vmatpush.msra.mxu0 0.0
    %406 = vmatpush.msra.mxu0 0.0
    %407 = vmatpush.msra.mxu0 0.0
    %408 = vmatpush.msra.mxu0 0.0
    %409 = vmatpush.msra.mxu0 0.0
    %410 = vmatpush.msra.mxu0 0.0
    %411 = vmatpush.msra.mxu0 0.0
    %412 = vmatpush.msra.mxu0 0.0
    %413 = vmatpush.msra.mxu0 %v190
    %414 = vmatpush.msra.mxu0 %v189
    %415 = vmatpush.msra.mxu0 %v188
    %416 = vmatpush.msra.mxu0 %v187
    %417 = vmatmul.f32.gmra.mxu0 %v399
    %v418 = vpop.f32.mrf.mxu0
    %v419 = vadd.f32 0.0, %v418
    %420 = vdwg.mxu0
    %v421 = vadd.f32 %v398, %v419
    %v422 = vxor.u32 %v421, 2147483648
    %v423 = vmul.f32 %v422, 1.442695
    %v424 = vpow.pop %v423
    %v425 = vadd.f32 %v424, 1.0
    %v426 = vrcp.pop %v425
    %v427 = vmul.f32 %v425, %v426
    %v428 = vsub.f32 1.0, %v427
    %v429 = vmul.f32 %v426, %v428
    %v430 = vadd.f32 %v426, %v429
    %vm431 = vweird.f32 %v425
    %vm432 = vweird.f32 %v426
    %vm433 = vmor %vm431, %vm432
    %v434 = vsel %vm433, %v426, %v430
    %v435 = vand.u32 2147483647, %v425
    %vm436 = vcmp.eq.f32.partialorder %v435, 8.507059e+37
    %v437 = vand.u32 %v425, 2147483648
    %v438 = vor.u32 1.1754944e-38, %v437
    %v439 = vsel %vm436, %v438, %v434
    %v440 = vmul.f32 1.0, %v439
    %v441 = vtanh.pop %v421
    %v442 = vmul.f32 %v440, %v386
    %444 = vrot.lane.b32.xlu0 %v441, 32
    %v445 = vpop.permute.xlu0 %444
    %v447 = vmul.f32 %v440, %v445
    %449 = vrot.lane.b32.xlu0 %v447, 32
    %v450 = vpop.permute.xlu0 %449
    %v452 = vadd.f32 %v442, %v450
    %v453 = vtanh.pop %v452
    %455 = vrot.lane.b32.xlu0 %v453, 32
    %v456 = vpop.permute.xlu0 %455
    %v458 = vmul.f32 %v440, %v456
    %460 = vrot.lane.b32.xlu0 %v458, 64
    %v461 = vpop.permute.xlu0 %460
    %463 = vst.msk [vmem:[#allocation2 + $0x6] sm:$0x3] %vm264, %v461
    %v464 = vld [vmem:[#allocation3 + $0x8] sm:$0x3]
    %v465 = vsel %vm194, %v461, 0
    %467 = vmatpush.msra.mxu0 0.0
    %468 = vmatpush.msra.mxu0 0.0
    %469 = vmatpush.msra.mxu0 0.0
    %470 = vmatpush.msra.mxu0 0.0
    %471 = vmatpush.msra.mxu0 0.0
    %472 = vmatpush.msra.mxu0 0.0
    %473 = vmatpush.msra.mxu0 0.0
    %474 = vmatpush.msra.mxu0 0.0
    %475 = vmatpush.msra.mxu0 0.0
    %476 = vmatpush.msra.mxu0 0.0
    %477 = vmatpush.msra.mxu0 0.0
    %478 = vmatpush.msra.mxu0 0.0
    %479 = vmatpush.msra.mxu0 %v190
    %480 = vmatpush.msra.mxu0 %v189
    %481 = vmatpush.msra.mxu0 %v188
    %482 = vmatpush.msra.mxu0 %v187
    %483 = vmatmul.f32.gmra.mxu0 %v465
    %v484 = vpop.f32.mrf.mxu0
    %v485 = vadd.f32 0.0, %v484
    %486 = vdwg.mxu0
    %v487 = vadd.f32 %v464, %v485
    %v488 = vxor.u32 %v487, 2147483648
    %v489 = vmul.f32 %v488, 1.442695
    %v490 = vpow.pop %v489
    %v491 = vadd.f32 %v490, 1.0
    %v492 = vrcp.pop %v491
    %v493 = vmul.f32 %v491, %v492
    %v494 = vsub.f32 1.0, %v493
    %v495 = vmul.f32 %v492, %v494
    %v496 = vadd.f32 %v492, %v495
    %vm497 = vweird.f32 %v491
    %vm498 = vweird.f32 %v492
    %vm499 = vmor %vm497, %vm498
    %v500 = vsel %vm499, %v492, %v496
    %v501 = vand.u32 2147483647, %v491
    %vm502 = vcmp.eq.f32.partialorder %v501, 8.507059e+37
    %v503 = vand.u32 %v491, 2147483648
    %v504 = vor.u32 1.1754944e-38, %v503
    %v505 = vsel %vm502, %v504, %v500
    %v506 = vmul.f32 1.0, %v505
    %v507 = vtanh.pop %v487
    %v508 = vmul.f32 %v506, %v452
    %510 = vrot.lane.b32.xlu0 %v507, 32
    %v511 = vpop.permute.xlu0 %510
    %v513 = vmul.f32 %v506, %v511
    %515 = vrot.lane.b32.xlu0 %v513, 32
    %v516 = vpop.permute.xlu0 %515
    %v518 = vadd.f32 %v508, %v516
    %v519 = vtanh.pop %v518
    %521 = vrot.lane.b32.xlu0 %v519, 32
    %v522 = vpop.permute.xlu0 %521
    %v524 = vmul.f32 %v506, %v522
    %526 = vrot.lane.b32.xlu0 %v524, 64
    %v527 = vpop.permute.xlu0 %526
    %529 = vst.msk [vmem:[#allocation2 + $0x8] sm:$0x3] %vm264, %v527
    %v530 = vld [vmem:[#allocation3 + $0xa] sm:$0x3]
    %v531 = vsel %vm194, %v527, 0
    %533 = vmatpush.msra.mxu0 0.0
    %534 = vmatpush.msra.mxu0 0.0
    %535 = vmatpush.msra.mxu0 0.0
    %536 = vmatpush.msra.mxu0 0.0
    %537 = vmatpush.msra.mxu0 0.0
    %538 = vmatpush.msra.mxu0 0.0
    %539 = vmatpush.msra.mxu0 0.0
    %540 = vmatpush.msra.mxu0 0.0
    %541 = vmatpush.msra.mxu0 0.0
    %542 = vmatpush.msra.mxu0 0.0
    %543 = vmatpush.msra.mxu0 0.0
    %544 = vmatpush.msra.mxu0 0.0
    %545 = vmatpush.msra.mxu0 %v190
    %546 = vmatpush.msra.mxu0 %v189
    %547 = vmatpush.msra.mxu0 %v188
    %548 = vmatpush.msra.mxu0 %v187
    %549 = vmatmul.f32.gmra.mxu0 %v531
    %v550 = vpop.f32.mrf.mxu0
    %v551 = vadd.f32 0.0, %v550
    %552 = vdwg.mxu0
    %v553 = vadd.f32 %v530, %v551
    %v554 = vxor.u32 %v553, 2147483648
    %v555 = vmul.f32 %v554, 1.442695
    %v556 = vpow.pop %v555
    %v557 = vadd.f32 %v556, 1.0
    %v558 = vrcp.pop %v557
    %v559 = vmul.f32 %v557, %v558
    %v560 = vsub.f32 1.0, %v559
    %v561 = vmul.f32 %v558, %v560
    %v562 = vadd.f32 %v558, %v561
    %vm563 = vweird.f32 %v557
    %vm564 = vweird.f32 %v558
    %vm565 = vmor %vm563, %vm564
    %v566 = vsel %vm565, %v558, %v562
    %v567 = vand.u32 2147483647, %v557
    %vm568 = vcmp.eq.f32.partialorder %v567, 8.507059e+37
    %v569 = vand.u32 %v557, 2147483648
    %v570 = vor.u32 1.1754944e-38, %v569
    %v571 = vsel %vm568, %v570, %v566
    %v572 = vmul.f32 1.0, %v571
    %v573 = vtanh.pop %v553
    %v574 = vmul.f32 %v572, %v518
    %576 = vrot.lane.b32.xlu0 %v573, 32
    %v577 = vpop.permute.xlu0 %576
    %v579 = vmul.f32 %v572, %v577
    %581 = vrot.lane.b32.xlu0 %v579, 32
    %v582 = vpop.permute.xlu0 %581
    %v584 = vadd.f32 %v574, %v582
    %v585 = vtanh.pop %v584
    %587 = vrot.lane.b32.xlu0 %v585, 32
    %v588 = vpop.permute.xlu0 %587
    %v590 = vmul.f32 %v572, %v588
    %592 = vrot.lane.b32.xlu0 %v590, 64
    %v593 = vpop.permute.xlu0 %592
    %595 = vst.msk [vmem:[#allocation2 + $0xa] sm:$0x3] %vm264, %v593
    %v596 = vld [vmem:[#allocation3 + $0xc] sm:$0x3]
    %v597 = vsel %vm194, %v593, 0
    %599 = vmatpush.msra.mxu0 0.0
    %600 = vmatpush.msra.mxu0 0.0
    %601 = vmatpush.msra.mxu0 0.0
    %602 = vmatpush.msra.mxu0 0.0
    %603 = vmatpush.msra.mxu0 0.0
    %604 = vmatpush.msra.mxu0 0.0
    %605 = vmatpush.msra.mxu0 0.0
    %606 = vmatpush.msra.mxu0 0.0
    %607 = vmatpush.msra.mxu0 0.0
    %608 = vmatpush.msra.mxu0 0.0
    %609 = vmatpush.msra.mxu0 0.0
    %610 = vmatpush.msra.mxu0 0.0
    %611 = vmatpush.msra.mxu0 %v190
    %612 = vmatpush.msra.mxu0 %v189
    %613 = vmatpush.msra.mxu0 %v188
    %614 = vmatpush.msra.mxu0 %v187
    %615 = vmatmul.f32.gmra.mxu0 %v597
    %v616 = vpop.f32.mrf.mxu0
    %v617 = vadd.f32 0.0, %v616
    %618 = vdwg.mxu0
    %v619 = vadd.f32 %v596, %v617
    %v620 = vxor.u32 %v619, 2147483648
    %v621 = vmul.f32 %v620, 1.442695
    %v622 = vpow.pop %v621
    %v623 = vadd.f32 %v622, 1.0
    %v624 = vrcp.pop %v623
    %v625 = vmul.f32 %v623, %v624
    %v626 = vsub.f32 1.0, %v625
    %v627 = vmul.f32 %v624, %v626
    %v628 = vadd.f32 %v624, %v627
    %vm629 = vweird.f32 %v623
    %vm630 = vweird.f32 %v624
    %vm631 = vmor %vm629, %vm630
    %v632 = vsel %vm631, %v624, %v628
    %v633 = vand.u32 2147483647, %v623
    %vm634 = vcmp.eq.f32.partialorder %v633, 8.507059e+37
    %v635 = vand.u32 %v623, 2147483648
    %v636 = vor.u32 1.1754944e-38, %v635
    %v637 = vsel %vm634, %v636, %v632
    %v638 = vmul.f32 1.0, %v637
    %v639 = vtanh.pop %v619
    %v640 = vmul.f32 %v638, %v584
    %642 = vrot.lane.b32.xlu0 %v639, 32
    %v643 = vpop.permute.xlu0 %642
    %v645 = vmul.f32 %v638, %v643
    %647 = vrot.lane.b32.xlu0 %v645, 32
    %v648 = vpop.permute.xlu0 %647
    %v650 = vadd.f32 %v640, %v648
    %v651 = vtanh.pop %v650
    %653 = vrot.lane.b32.xlu0 %v651, 32
    %v654 = vpop.permute.xlu0 %653
    %v656 = vmul.f32 %v638, %v654
    %658 = vrot.lane.b32.xlu0 %v656, 64
    %v659 = vpop.permute.xlu0 %658
    %661 = vst.msk [vmem:[#allocation2 + $0xc] sm:$0x3] %vm264, %v659
    %v662 = vld [vmem:[#allocation3 + $0xe] sm:$0x3]
    %v663 = vsel %vm194, %v659, 0
    %665 = vmatpush.msra.mxu0 0.0
    %666 = vmatpush.msra.mxu0 0.0
    %667 = vmatpush.msra.mxu0 0.0
    %668 = vmatpush.msra.mxu0 0.0
    %669 = vmatpush.msra.mxu0 0.0
    %670 = vmatpush.msra.mxu0 0.0
    %671 = vmatpush.msra.mxu0 0.0
    %672 = vmatpush.msra.mxu0 0.0
    %673 = vmatpush.msra.mxu0 0.0
    %674 = vmatpush.msra.mxu0 0.0
    %675 = vmatpush.msra.mxu0 0.0
    %676 = vmatpush.msra.mxu0 0.0
    %677 = vmatpush.msra.mxu0 %v190
    %678 = vmatpush.msra.mxu0 %v189
    %679 = vmatpush.msra.mxu0 %v188
    %680 = vmatpush.msra.mxu0 %v187
    %681 = vmatmul.f32.gmra.mxu0 %v663
    %v682 = vpop.f32.mrf.mxu0
    %v683 = vadd.f32 0.0, %v682
    %684 = vdwg.mxu0
    %v685 = vadd.f32 %v662, %v683
    %v686 = vxor.u32 %v685, 2147483648
    %v687 = vmul.f32 %v686, 1.442695
    %v688 = vpow.pop %v687
    %v689 = vadd.f32 %v688, 1.0
    %v690 = vrcp.pop %v689
    %v691 = vmul.f32 %v689, %v690
    %v692 = vsub.f32 1.0, %v691
    %v693 = vmul.f32 %v690, %v692
    %v694 = vadd.f32 %v690, %v693
    %vm695 = vweird.f32 %v689
    %vm696 = vweird.f32 %v690
    %vm697 = vmor %vm695, %vm696
    %v698 = vsel %vm697, %v690, %v694
    %v699 = vand.u32 2147483647, %v689
    %vm700 = vcmp.eq.f32.partialorder %v699, 8.507059e+37
    %v701 = vand.u32 %v689, 2147483648
    %v702 = vor.u32 1.1754944e-38, %v701
    %v703 = vsel %vm700, %v702, %v698
    %v704 = vmul.f32 1.0, %v703
    %v705 = vtanh.pop %v685
    %v706 = vmul.f32 %v704, %v650
    %708 = vrot.lane.b32.xlu0 %v705, 32
    %v709 = vpop.permute.xlu0 %708
    %v711 = vmul.f32 %v704, %v709
    %713 = vrot.lane.b32.xlu0 %v711, 32
    %v714 = vpop.permute.xlu0 %713
    %v716 = vadd.f32 %v706, %v714
    %v717 = vtanh.pop %v716
    %719 = vrot.lane.b32.xlu0 %v717, 32
    %v720 = vpop.permute.xlu0 %719
    %v722 = vmul.f32 %v704, %v720
    %724 = vrot.lane.b32.xlu0 %v722, 64
    %v725 = vpop.permute.xlu0 %724
    %727 = vst.msk [vmem:[#allocation2 + $0xe] sm:$0x3] %vm264, %v725
    %728 = vst.msk [vmem:[%s19] sm:$0x3] %vm264, %v725
    %730 = vrot.lane.b32.xlu0 %v716, 96
    %v731 = vpop.permute.xlu0 %730
    %733 = vst.msk [vmem:[%s20] sm:$0x3] %vm264, %v731
    %v734 = vld [vmem:[#allocation2] sm:$0xff]
    %v735 = vld [vmem:[#allocation2 + $0x8] sm:$0xff]
    %v736 = vld [vmem:[#allocation4] sm:$0xff]
    %v737 = vld [vmem:[#allocation4 + $0x8] sm:$0xff]
    %v738 = vld [vmem:[#allocation4 + $0x10] sm:$0xff]
    %v739 = vld [vmem:[#allocation4 + $0x18] sm:$0xff]
    %v740 = vld [vmem:[%s8] sm:$0x1]
    %v742 = vperm.slane %v740, 0
    %v745 = vsel %vm194, %v734, 0
    %v748 = vsel %vm194, %v735, 0
    %750 = vmatpush.msra.mxu0 0.0
    %751 = vmatpush.msra.mxu0 0.0
    %752 = vmatpush.msra.mxu0 0.0
    %753 = vmatpush.msra.mxu0 0.0
    %754 = vmatpush.msra.mxu0 0.0
    %755 = vmatpush.msra.mxu0 0.0
    %756 = vmatpush.msra.mxu0 0.0
    %757 = vmatpush.msra.mxu0 0.0
    %758 = vmatpush.msra.mxu0 0.0
    %759 = vmatpush.msra.mxu0 0.0
    %760 = vmatpush.msra.mxu0 0.0
    %761 = vmatpush.msra.mxu0 0.0
    %762 = vmatpush.msra.mxu0 %v739
    %763 = vmatpush.msra.mxu0 %v738
    %764 = vmatpush.msra.mxu0 %v737
    %765 = vmatpush.msra.mxu0 %v736
    %766 = vmatmul.f32.gmra.mxu0 %v745
    %v767 = vpop.f32.mrf.mxu0
    %v768 = vadd.f32 %v742, %v767
    %769 = vmatmul.f32.gmra.mxu0 %v748
    %v770 = vpop.f32.mrf.mxu0
    %v771 = vadd.f32 %v742, %v770
    %772 = vdwg.mxu0
    %773 = vst [vmem:[#allocation3] sm:$0xff] %v768
    %774 = vst [vmem:[#allocation3 + $0x8] sm:$0xff] %v771
    %v775 = vld [vmem:[#allocation6] sm:$0xff]
    %v776 = vld [vmem:[#allocation6 + $0x8] sm:$0xff]
    %v777 = vld [vmem:[#allocation6 + $0x10] sm:$0xff]
    %v778 = vld [vmem:[#allocation6 + $0x18] sm:$0xff]
    %v779 = vld [vmem:[%s9] sm:$0xf]
    %v780 = vld [vmem:[%s10] sm:$0xf]
    %v781 = vld [vmem:[#allocation3] sm:$0xf]
    %v783 = vsel %vm194, %v779, 0
    %785 = vmatpush.msra.mxu0 0.0
    %786 = vmatpush.msra.mxu0 0.0
    %787 = vmatpush.msra.mxu0 0.0
    %788 = vmatpush.msra.mxu0 0.0
    %789 = vmatpush.msra.mxu0 0.0
    %790 = vmatpush.msra.mxu0 0.0
    %791 = vmatpush.msra.mxu0 0.0
    %792 = vmatpush.msra.mxu0 0.0
    %793 = vmatpush.msra.mxu0 0.0
    %794 = vmatpush.msra.mxu0 0.0
    %795 = vmatpush.msra.mxu0 0.0
    %796 = vmatpush.msra.mxu0 0.0
    %797 = vmatpush.msra.mxu0 %v778
    %798 = vmatpush.msra.mxu0 %v777
    %799 = vmatpush.msra.mxu0 %v776
    %800 = vmatpush.msra.mxu0 %v775
    %801 = vmatmul.f32.gmra.mxu0 %v783
    %v802 = vpop.f32.mrf.mxu0
    %v803 = vadd.f32 0.0, %v802
    %804 = vdwg.mxu0
    %v805 = vadd.f32 %v781, %v803
    %v806 = vxor.u32 %v805, 2147483648
    %v807 = vmul.f32 %v806, 1.442695
    %v808 = vpow.pop %v807
    %v809 = vadd.f32 %v808, 1.0
    %v810 = vrcp.pop %v809
    %v811 = vmul.f32 %v809, %v810
    %v812 = vsub.f32 1.0, %v811
    %v813 = vmul.f32 %v810, %v812
    %v814 = vadd.f32 %v810, %v813
    %vm815 = vweird.f32 %v809
    %vm816 = vweird.f32 %v810
    %vm817 = vmor %vm815, %vm816
    %v818 = vsel %vm817, %v810, %v814
    %v819 = vand.u32 2147483647, %v809
    %vm820 = vcmp.eq.f32.partialorder %v819, 8.507059e+37
    %v821 = vand.u32 %v809, 2147483648
    %v822 = vor.u32 1.1754944e-38, %v821
    %v823 = vsel %vm820, %v822, %v818
    %v824 = vmul.f32 1.0, %v823
    %v825 = vtanh.pop %v805
    %827 = vrot.lane.b32.xlu0 %v780, 32
    %v828 = vpop.permute.xlu0 %827
    %v830 = vmul.f32 %v824, %v828
    %832 = vrot.lane.b32.xlu0 %v825, 32
    %v833 = vpop.permute.xlu0 %832
    %v835 = vmul.f32 %v824, %v833
    %837 = vrot.lane.b32.xlu0 %v835, 32
    %v838 = vpop.permute.xlu0 %837
    %v840 = vadd.f32 %v830, %v838
    %v841 = vtanh.pop %v840
    %843 = vrot.lane.b32.xlu0 %v841, 32
    %v844 = vpop.permute.xlu0 %843
    %v846 = vmul.f32 %v824, %v844
    %848 = vrot.lane.b32.xlu0 %v846, 64
    %v849 = vpop.permute.xlu0 %848
    %vm851 = vcmask 257024
    %852 = vst.msk [vmem:[#allocation2] sm:$0xf] %vm851, %v849
    %v853 = vld [vmem:[#allocation3 + $0x4] sm:$0xf]
    %v854 = vsel %vm194, %v849, 0
    %856 = vmatpush.msra.mxu0 0.0
    %857 = vmatpush.msra.mxu0 0.0
    %858 = vmatpush.msra.mxu0 0.0
    %859 = vmatpush.msra.mxu0 0.0
    %860 = vmatpush.msra.mxu0 0.0
    %861 = vmatpush.msra.mxu0 0.0
    %862 = vmatpush.msra.mxu0 0.0
    %863 = vmatpush.msra.mxu0 0.0
    %864 = vmatpush.msra.mxu0 0.0
    %865 = vmatpush.msra.mxu0 0.0
    %866 = vmatpush.msra.mxu0 0.0
    %867 = vmatpush.msra.mxu0 0.0
    %868 = vmatpush.msra.mxu0 %v778
    %869 = vmatpush.msra.mxu0 %v777
    %870 = vmatpush.msra.mxu0 %v776
    %871 = vmatpush.msra.mxu0 %v775
    %872 = vmatmul.f32.gmra.mxu0 %v854
    %v873 = vpop.f32.mrf.mxu0
    %v874 = vadd.f32 0.0, %v873
    %875 = vdwg.mxu0
    %v876 = vadd.f32 %v853, %v874
    %v877 = vxor.u32 %v876, 2147483648
    %v878 = vmul.f32 %v877, 1.442695
    %v879 = vpow.pop %v878
    %v880 = vadd.f32 %v879, 1.0
    %v881 = vrcp.pop %v880
    %v882 = vmul.f32 %v880, %v881
    %v883 = vsub.f32 1.0, %v882
    %v884 = vmul.f32 %v881, %v883
    %v885 = vadd.f32 %v881, %v884
    %vm886 = vweird.f32 %v880
    %vm887 = vweird.f32 %v881
    %vm888 = vmor %vm886, %vm887
    %v889 = vsel %vm888, %v881, %v885
    %v890 = vand.u32 2147483647, %v880
    %vm891 = vcmp.eq.f32.partialorder %v890, 8.507059e+37
    %v892 = vand.u32 %v880, 2147483648
    %v893 = vor.u32 1.1754944e-38, %v892
    %v894 = vsel %vm891, %v893, %v889
    %v895 = vmul.f32 1.0, %v894
    %v896 = vtanh.pop %v876
    %v897 = vmul.f32 %v895, %v840
    %899 = vrot.lane.b32.xlu0 %v896, 32
    %v900 = vpop.permute.xlu0 %899
    %v902 = vmul.f32 %v895, %v900
    %904 = vrot.lane.b32.xlu0 %v902, 32
    %v905 = vpop.permute.xlu0 %904
    %v907 = vadd.f32 %v897, %v905
    %v908 = vtanh.pop %v907
    %910 = vrot.lane.b32.xlu0 %v908, 32
    %v911 = vpop.permute.xlu0 %910
    %v913 = vmul.f32 %v895, %v911
    %915 = vrot.lane.b32.xlu0 %v913, 64
    %v916 = vpop.permute.xlu0 %915
    %918 = vst.msk [vmem:[#allocation2 + $0x4] sm:$0xf] %vm851, %v916
    %v919 = vld [vmem:[#allocation3 + $0x8] sm:$0xf]
    %v920 = vsel %vm194, %v916, 0
    %922 = vmatpush.msra.mxu0 0.0
    %923 = vmatpush.msra.mxu0 0.0
    %924 = vmatpush.msra.mxu0 0.0
    %925 = vmatpush.msra.mxu0 0.0
    %926 = vmatpush.msra.mxu0 0.0
    %927 = vmatpush.msra.mxu0 0.0
    %928 = vmatpush.msra.mxu0 0.0
    %929 = vmatpush.msra.mxu0 0.0
    %930 = vmatpush.msra.mxu0 0.0
    %931 = vmatpush.msra.mxu0 0.0
    %932 = vmatpush.msra.mxu0 0.0
    %933 = vmatpush.msra.mxu0 0.0
    %934 = vmatpush.msra.mxu0 %v778
    %935 = vmatpush.msra.mxu0 %v777
    %936 = vmatpush.msra.mxu0 %v776
    %937 = vmatpush.msra.mxu0 %v775
    %938 = vmatmul.f32.gmra.mxu0 %v920
    %v939 = vpop.f32.mrf.mxu0
    %v940 = vadd.f32 0.0, %v939
    %941 = vdwg.mxu0
    %v942 = vadd.f32 %v919, %v940
    %v943 = vxor.u32 %v942, 2147483648
    %v944 = vmul.f32 %v943, 1.442695
    %v945 = vpow.pop %v944
    %v946 = vadd.f32 %v945, 1.0
    %v947 = vrcp.pop %v946
    %v948 = vmul.f32 %v946, %v947
    %v949 = vsub.f32 1.0, %v948
    %v950 = vmul.f32 %v947, %v949
    %v951 = vadd.f32 %v947, %v950
    %vm952 = vweird.f32 %v946
    %vm953 = vweird.f32 %v947
    %vm954 = vmor %vm952, %vm953
    %v955 = vsel %vm954, %v947, %v951
    %v956 = vand.u32 2147483647, %v946
    %vm957 = vcmp.eq.f32.partialorder %v956, 8.507059e+37
    %v958 = vand.u32 %v946, 2147483648
    %v959 = vor.u32 1.1754944e-38, %v958
    %v960 = vsel %vm957, %v959, %v955
    %v961 = vmul.f32 1.0, %v960
    %v962 = vtanh.pop %v942
    %v963 = vmul.f32 %v961, %v907
    %965 = vrot.lane.b32.xlu0 %v962, 32
    %v966 = vpop.permute.xlu0 %965
    %v968 = vmul.f32 %v961, %v966
    %970 = vrot.lane.b32.xlu0 %v968, 32
    %v971 = vpop.permute.xlu0 %970
    %v973 = vadd.f32 %v963, %v971
    %v974 = vtanh.pop %v973
    %976 = vrot.lane.b32.xlu0 %v974, 32
    %v977 = vpop.permute.xlu0 %976
    %v979 = vmul.f32 %v961, %v977
    %981 = vrot.lane.b32.xlu0 %v979, 64
    %v982 = vpop.permute.xlu0 %981
    %984 = vst.msk [vmem:[#allocation2 + $0x8] sm:$0xf] %vm851, %v982
    %v985 = vld [vmem:[#allocation3 + $0xc] sm:$0xf]
    %v986 = vsel %vm194, %v982, 0
    %988 = vmatpush.msra.mxu0 0.0
    %989 = vmatpush.msra.mxu0 0.0
    %990 = vmatpush.msra.mxu0 0.0
    %991 = vmatpush.msra.mxu0 0.0
    %992 = vmatpush.msra.mxu0 0.0
    %993 = vmatpush.msra.mxu0 0.0
    %994 = vmatpush.msra.mxu0 0.0
    %995 = vmatpush.msra.mxu0 0.0
    %996 = vmatpush.msra.mxu0 0.0
    %997 = vmatpush.msra.mxu0 0.0
    %998 = vmatpush.msra.mxu0 0.0
    %999 = vmatpush.msra.mxu0 0.0
    %1000 = vmatpush.msra.mxu0 %v778
    %1001 = vmatpush.msra.mxu0 %v777
    %1002 = vmatpush.msra.mxu0 %v776
    %1003 = vmatpush.msra.mxu0 %v775
    %1004 = vmatmul.f32.gmra.mxu0 %v986
    %v1005 = vpop.f32.mrf.mxu0
    %v1006 = vadd.f32 0.0, %v1005
    %1007 = vdwg.mxu0
    %v1008 = vadd.f32 %v985, %v1006
    %v1009 = vxor.u32 %v1008, 2147483648
    %v1010 = vmul.f32 %v1009, 1.442695
    %v1011 = vpow.pop %v1010
    %v1012 = vadd.f32 %v1011, 1.0
    %v1013 = vrcp.pop %v1012
    %v1014 = vmul.f32 %v1012, %v1013
    %v1015 = vsub.f32 1.0, %v1014
    %v1016 = vmul.f32 %v1013, %v1015
    %v1017 = vadd.f32 %v1013, %v1016
    %vm1018 = vweird.f32 %v1012
    %vm1019 = vweird.f32 %v1013
    %vm1020 = vmor %vm1018, %vm1019
    %v1021 = vsel %vm1020, %v1013, %v1017
    %v1022 = vand.u32 2147483647, %v1012
    %vm1023 = vcmp.eq.f32.partialorder %v1022, 8.507059e+37
    %v1024 = vand.u32 %v1012, 2147483648
    %v1025 = vor.u32 1.1754944e-38, %v1024
    %v1026 = vsel %vm1023, %v1025, %v1021
    %v1027 = vmul.f32 1.0, %v1026
    %v1028 = vtanh.pop %v1008
    %v1029 = vmul.f32 %v1027, %v973
    %1031 = vrot.lane.b32.xlu0 %v1028, 32
    %v1032 = vpop.permute.xlu0 %1031
    %v1034 = vmul.f32 %v1027, %v1032
    %1036 = vrot.lane.b32.xlu0 %v1034, 32
    %v1037 = vpop.permute.xlu0 %1036
    %v1039 = vadd.f32 %v1029, %v1037
    %v1040 = vtanh.pop %v1039
    %1042 = vrot.lane.b32.xlu0 %v1040, 32
    %v1043 = vpop.permute.xlu0 %1042
    %v1045 = vmul.f32 %v1027, %v1043
    %1047 = vrot.lane.b32.xlu0 %v1045, 64
    %v1048 = vpop.permute.xlu0 %1047
    %1050 = vst.msk [vmem:[#allocation2 + $0xc] sm:$0xf] %vm851, %v1048
    %1051 = vst.msk [vmem:[%s21] sm:$0xf] %vm851, %v1048
    %1053 = vrot.lane.b32.xlu0 %v1039, 96
    %v1054 = vpop.permute.xlu0 %1053
    %1056 = vst.msk [vmem:[%s22] sm:$0xf] %vm851, %v1054
    %v1057 = vld [vmem:[#allocation2] sm:$0xff]
    %v1058 = vld [vmem:[#allocation2 + $0x8] sm:$0xff]
    %v1059 = vld [vmem:[#allocation8] sm:$0xff]
    %v1060 = vld [vmem:[#allocation8 + $0x8] sm:$0xff]
    %v1061 = vld [vmem:[#allocation8 + $0x10] sm:$0xff]
    %v1062 = vld [vmem:[#allocation8 + $0x18] sm:$0xff]
    %v1063 = vld [vmem:[%s13] sm:$0x1]
    %v1065 = vperm.slane %v1063, 0
    %v1068 = vsel %vm194, %v1057, 0
    %v1071 = vsel %vm194, %v1058, 0
    %1073 = vmatpush.msra.mxu0 0.0
    %1074 = vmatpush.msra.mxu0 0.0
    %1075 = vmatpush.msra.mxu0 0.0
    %1076 = vmatpush.msra.mxu0 0.0
    %1077 = vmatpush.msra.mxu0 0.0
    %1078 = vmatpush.msra.mxu0 0.0
    %1079 = vmatpush.msra.mxu0 0.0
    %1080 = vmatpush.msra.mxu0 0.0
    %1081 = vmatpush.msra.mxu0 0.0
    %1082 = vmatpush.msra.mxu0 0.0
    %1083 = vmatpush.msra.mxu0 0.0
    %1084 = vmatpush.msra.mxu0 0.0
    %1085 = vmatpush.msra.mxu0 %v1062
    %1086 = vmatpush.msra.mxu0 %v1061
    %1087 = vmatpush.msra.mxu0 %v1060
    %1088 = vmatpush.msra.mxu0 %v1059
    %1089 = vmatmul.f32.gmra.mxu0 %v1068
    %v1090 = vpop.f32.mrf.mxu0
    %v1091 = vadd.f32 %v1065, %v1090
    %1092 = vmatmul.f32.gmra.mxu0 %v1071
    %v1093 = vpop.f32.mrf.mxu0
    %v1094 = vadd.f32 %v1065, %v1093
    %1095 = vdwg.mxu0
    %1096 = vst [vmem:[#allocation3] sm:$0xff] %v1091
    %1097 = vst [vmem:[#allocation3 + $0x8] sm:$0xff] %v1094
    %v1098 = vld [vmem:[#allocation9] sm:$0xff]
    %v1099 = vld [vmem:[#allocation9 + $0x8] sm:$0xff]
    %v1100 = vld [vmem:[#allocation9 + $0x10] sm:$0xff]
    %v1101 = vld [vmem:[#allocation9 + $0x18] sm:$0xff]
    %v1102 = vld [vmem:[%s14] sm:$0xff]
    %v1103 = vld [vmem:[%s15] sm:$0xff]
    %v1104 = vld [vmem:[#allocation3] sm:$0xff]
    %v1106 = vsel %vm194, %v1102, 0
    %1108 = vmatpush.msra.mxu0 0.0
    %1109 = vmatpush.msra.mxu0 0.0
    %1110 = vmatpush.msra.mxu0 0.0
    %1111 = vmatpush.msra.mxu0 0.0
    %1112 = vmatpush.msra.mxu0 0.0
    %1113 = vmatpush.msra.mxu0 0.0
    %1114 = vmatpush.msra.mxu0 0.0
    %1115 = vmatpush.msra.mxu0 0.0
    %1116 = vmatpush.msra.mxu0 0.0
    %1117 = vmatpush.msra.mxu0 0.0
    %1118 = vmatpush.msra.mxu0 0.0
    %1119 = vmatpush.msra.mxu0 0.0
    %1120 = vmatpush.msra.mxu0 %v1101
    %1121 = vmatpush.msra.mxu0 %v1100
    %1122 = vmatpush.msra.mxu0 %v1099
    %1123 = vmatpush.msra.mxu0 %v1098
    %1124 = vmatmul.f32.gmra.mxu0 %v1106
    %v1125 = vpop.f32.mrf.mxu0
    %v1126 = vadd.f32 0.0, %v1125
    %1127 = vdwg.mxu0
    %v1128 = vadd.f32 %v1104, %v1126
    %v1129 = vxor.u32 %v1128, 2147483648
    %v1130 = vmul.f32 %v1129, 1.442695
    %v1131 = vpow.pop %v1130
    %v1132 = vadd.f32 %v1131, 1.0
    %v1133 = vrcp.pop %v1132
    %v1134 = vmul.f32 %v1132, %v1133
    %v1135 = vsub.f32 1.0, %v1134
    %v1136 = vmul.f32 %v1133, %v1135
    %v1137 = vadd.f32 %v1133, %v1136
    %vm1138 = vweird.f32 %v1132
    %vm1139 = vweird.f32 %v1133
    %vm1140 = vmor %vm1138, %vm1139
    %v1141 = vsel %vm1140, %v1133, %v1137
    %v1142 = vand.u32 2147483647, %v1132
    %vm1143 = vcmp.eq.f32.partialorder %v1142, 8.507059e+37
    %v1144 = vand.u32 %v1132, 2147483648
    %v1145 = vor.u32 1.1754944e-38, %v1144
    %v1146 = vsel %vm1143, %v1145, %v1141
    %v1147 = vmul.f32 1.0, %v1146
    %v1148 = vtanh.pop %v1128
    %1150 = vrot.lane.b32.xlu0 %v1103, 32
    %v1151 = vpop.permute.xlu0 %1150
    %v1153 = vmul.f32 %v1147, %v1151
    %1155 = vrot.lane.b32.xlu0 %v1148, 32
    %v1156 = vpop.permute.xlu0 %1155
    %v1158 = vmul.f32 %v1147, %v1156
    %1160 = vrot.lane.b32.xlu0 %v1158, 32
    %v1161 = vpop.permute.xlu0 %1160
    %v1163 = vadd.f32 %v1153, %v1161
    %v1164 = vtanh.pop %v1163
    %1166 = vrot.lane.b32.xlu0 %v1164, 32
    %v1167 = vpop.permute.xlu0 %1166
    %v1169 = vmul.f32 %v1147, %v1167
    %1171 = vrot.lane.b32.xlu0 %v1169, 64
    %v1172 = vpop.permute.xlu0 %1171
    %1174 = vst.msk [vmem:[#allocation2] sm:$0xff] %vm194, %v1172
    %v1175 = vld [vmem:[#allocation3 + $0x8] sm:$0xff]
    %v1176 = vsel %vm194, %v1172, 0
    %1178 = vmatpush.msra.mxu0 0.0
    %1179 = vmatpush.msra.mxu0 0.0
    %1180 = vmatpush.msra.mxu0 0.0
    %1181 = vmatpush.msra.mxu0 0.0
    %1182 = vmatpush.msra.mxu0 0.0
    %1183 = vmatpush.msra.mxu0 0.0
    %1184 = vmatpush.msra.mxu0 0.0
    %1185 = vmatpush.msra.mxu0 0.0
    %1186 = vmatpush.msra.mxu0 0.0
    %1187 = vmatpush.msra.mxu0 0.0
    %1188 = vmatpush.msra.mxu0 0.0
    %1189 = vmatpush.msra.mxu0 0.0
    %1190 = vmatpush.msra.mxu0 %v1101
    %1191 = vmatpush.msra.mxu0 %v1100
    %1192 = vmatpush.msra.mxu0 %v1099
    %1193 = vmatpush.msra.mxu0 %v1098
    %1194 = vmatmul.f32.gmra.mxu0 %v1176
    %v1195 = vpop.f32.mrf.mxu0
    %v1196 = vadd.f32 0.0, %v1195
    %1197 = vdwg.mxu0
    %v1198 = vadd.f32 %v1175, %v1196
    %v1199 = vxor.u32 %v1198, 2147483648
    %v1200 = vmul.f32 %v1199, 1.442695
    %v1201 = vpow.pop %v1200
    %v1202 = vadd.f32 %v1201, 1.0
    %v1203 = vrcp.pop %v1202
    %v1204 = vmul.f32 %v1202, %v1203
    %v1205 = vsub.f32 1.0, %v1204
    %v1206 = vmul.f32 %v1203, %v1205
    %v1207 = vadd.f32 %v1203, %v1206
    %vm1208 = vweird.f32 %v1202
    %vm1209 = vweird.f32 %v1203
    %vm1210 = vmor %vm1208, %vm1209
    %v1211 = vsel %vm1210, %v1203, %v1207
    %v1212 = vand.u32 2147483647, %v1202
    %vm1213 = vcmp.eq.f32.partialorder %v1212, 8.507059e+37
    %v1214 = vand.u32 %v1202, 2147483648
    %v1215 = vor.u32 1.1754944e-38, %v1214
    %v1216 = vsel %vm1213, %v1215, %v1211
    %v1217 = vmul.f32 1.0, %v1216
    %v1218 = vtanh.pop %v1198
    %v1219 = vmul.f32 %v1217, %v1163
    %1221 = vrot.lane.b32.xlu0 %v1218, 32
    %v1222 = vpop.permute.xlu0 %1221
    %v1224 = vmul.f32 %v1217, %v1222
    %1226 = vrot.lane.b32.xlu0 %v1224, 32
    %v1227 = vpop.permute.xlu0 %1226
    %v1229 = vadd.f32 %v1219, %v1227
    %v1230 = vtanh.pop %v1229
    %1232 = vrot.lane.b32.xlu0 %v1230, 32
    %v1233 = vpop.permute.xlu0 %1232
    %v1235 = vmul.f32 %v1217, %v1233
    %1237 = vrot.lane.b32.xlu0 %v1235, 64
    %v1238 = vpop.permute.xlu0 %1237
    %1240 = vst.msk [vmem:[#allocation2 + $0x8] sm:$0xff] %vm194, %v1238
    %1241 = vst.msk [vmem:[%s23] sm:$0xff] %vm194, %v1238
    %1243 = vrot.lane.b32.xlu0 %v1229, 96
    %v1244 = vpop.permute.xlu0 %1243
    %1246 = vst.msk [vmem:[%s24] sm:$0xff] %vm194, %v1244
    %v1247 = vld [vmem:[#allocation2] sm:$0xff]
    %v1248 = vld [vmem:[#allocation2 + $0x8] sm:$0xff]
    %v1249 = vld [vmem:[#allocation11] sm:$0xff]
    %v1250 = vld [vmem:[#allocation11 + $0x8] sm:$0xff]
    %v1251 = vld [vmem:[#allocation11 + $0x10] sm:$0xff]
    %v1252 = vld [vmem:[#allocation11 + $0x18] sm:$0xff]
    %v1253 = vld [vmem:[%s17] sm:$0x1]
    %v1255 = vperm.slane %v1253, 0
    %v1258 = vsel %vm194, %v1247, 0
    %v1261 = vsel %vm194, %v1248, 0
    %1263 = vmatpush.msra.mxu0 0.0
    %1264 = vmatpush.msra.mxu0 0.0
    %1265 = vmatpush.msra.mxu0 0.0
    %1266 = vmatpush.msra.mxu0 0.0
    %1267 = vmatpush.msra.mxu0 0.0
    %1268 = vmatpush.msra.mxu0 0.0
    %1269 = vmatpush.msra.mxu0 0.0
    %1270 = vmatpush.msra.mxu0 0.0
    %1271 = vmatpush.msra.mxu0 0.0
    %1272 = vmatpush.msra.mxu0 0.0
    %1273 = vmatpush.msra.mxu0 0.0
    %1274 = vmatpush.msra.mxu0 0.0
    %1275 = vmatpush.msra.mxu0 %v1252
    %1276 = vmatpush.msra.mxu0 %v1251
    %1277 = vmatpush.msra.mxu0 %v1250
    %1278 = vmatpush.msra.mxu0 %v1249
    %1279 = vmatmul.f32.gmra.mxu0 %v1258
    %v1280 = vpop.f32.mrf.mxu0
    %v1281 = vadd.f32 %v1255, %v1280
    %1282 = vmatmul.f32.gmra.mxu0 %v1261
    %v1283 = vpop.f32.mrf.mxu0
    %v1284 = vadd.f32 %v1255, %v1283
    %1285 = vdwg.mxu0
    %1286 = vst [vmem:[%s18] sm:$0xff] %v1281
    %1287 = vst [vmem:[%s18 + $0x8] sm:$0xff] %v1284
    // Predicated region
    $region94: #{dilated_rnn_forward.1} parent=1 // pred_check
      _
    $region95: #{dilated_rnn_forward.1} parent=1 // pred_check_branch
      %1289 = sbr.rel (0) target = $region97
    $region96: #{dilated_rnn_forward.1} parent=1 // pred_region
      _
    $region97: #{dilated_rnn_forward.1} parent=1 // pred_fallthru
      _
    // Predicated region
    $region98: #{dilated_rnn_forward.1} parent=1 // pred_check
      _
    $region99: #{dilated_rnn_forward.1} parent=1 // pred_check_branch
      %1291 = sbr.rel (0) target = $region101
    $region100: #{dilated_rnn_forward.1} parent=1 // pred_region
      _
    $region101: #{dilated_rnn_forward.1} parent=1 // pred_fallthru
      _
    // Predicated region
    $region102: #{dilated_rnn_forward.1} parent=1 // pred_check
      _
    $region103: #{dilated_rnn_forward.1} parent=1 // pred_check_branch
      %1293 = sbr.rel (0) target = $region105
    $region104: #{dilated_rnn_forward.1} parent=1 // pred_region
      _
    $region105: #{dilated_rnn_forward.1} parent=1 // pred_fallthru
      _
    // Predicated region
    $region106: #{dilated_rnn_forward.1} parent=1 // pred_check
      _
    $region107: #{dilated_rnn_forward.1} parent=1 // pred_check_branch
      %1295 = sbr.rel (0) target = $region109
    $region108: #{dilated_rnn_forward.1} parent=1 // pred_region
      _
    $region109: #{dilated_rnn_forward.1} parent=1 // pred_fallthru
      _
    // Predicated region
    $region110: #{dilated_rnn_forward.1} parent=1 // pred_check
      _
    $region111: #{dilated_rnn_forward.1} parent=1 // pred_check_branch
      %1297 = sbr.rel (0) target = $region113
    $region112: #{dilated_rnn_forward.1} parent=1 // pred_region
      _
    $region113: #{dilated_rnn_forward.1} parent=1 // pred_fallthru
      _
    // Predicated region
    $region114: #{dilated_rnn_forward.1} parent=1 // pred_check
      _
    $region115: #{dilated_rnn_forward.1} parent=1 // pred_check_branch
      %1299 = sbr.rel (0) target = $region117
    $region116: #{dilated_rnn_forward.1} parent=1 // pred_region
      _
    $region117: #{dilated_rnn_forward.1} parent=1 // pred_fallthru
      _
    // Predicated region
    $region118: #{dilated_rnn_forward.1} parent=1 // pred_check
      _
    $region119: #{dilated_rnn_forward.1} parent=1 // pred_check_branch
      %1301 = sbr.rel (0) target = $region121
    $region120: #{dilated_rnn_forward.1} parent=1 // pred_region
      _
    $region121: #{dilated_rnn_forward.1} parent=1 // pred_fallthru
      _
    // Predicated region
    $region122: #{dilated_rnn_forward.1} parent=1 // pred_check
      _
    $region123: #{dilated_rnn_forward.1} parent=1 // pred_check_branch
      %1303 = sbr.rel (0) target = $region125
    $region124: #{dilated_rnn_forward.1} parent=1 // pred_region
      _
    $region125: #{dilated_rnn_forward.1} parent=1 // pred_fallthru
      _
    // Predicated region
    $region126: #{dilated_rnn_forward.1} parent=1 // pred_check
      _
    $region127: #{dilated_rnn_forward.1} parent=1 // pred_check_branch
      %1305 = sbr.rel (0) target = $region129
    $region128: #{dilated_rnn_forward.1} parent=1 // pred_region
      _
    $region129: #{dilated_rnn_forward.1} parent=1 // pred_fallthru
      _
    // Predicated region
    $region130: #{dilated_rnn_forward.1} parent=1 // pred_check
      _
    $region131: #{dilated_rnn_forward.1} parent=1 // pred_check_branch
      %1307 = sbr.rel (0) target = $region133
    $region132: #{dilated_rnn_forward.1} parent=1 // pred_region
      _
    $region133: #{dilated_rnn_forward.1} parent=1 // pred_fallthru
      _
    // Predicated region
    $region134: #{dilated_rnn_forward.1} parent=1 // pred_check
      _
    $region135: #{dilated_rnn_forward.1} parent=1 // pred_check_branch
      %1309 = sbr.rel (0) target = $region137
    $region136: #{dilated_rnn_forward.1} parent=1 // pred_region
      _
    $region137: #{dilated_rnn_forward.1} parent=1 // pred_fallthru
      _
    // Predicated region
    $region138: #{dilated_rnn_forward.1} parent=1 // pred_check
      _
    $region139: #{dilated_rnn_forward.1} parent=1 // pred_check_branch
      %1311 = sbr.rel (0) target = $region141
    $region140: #{dilated_rnn_forward.1} parent=1 // pred_region
      _
    $region141: #{dilated_rnn_forward.1} parent=1 // pred_fallthru
      _
    // Predicated region
    $region142: #{dilated_rnn_forward.1} parent=1 // pred_check
      _
    $region143: #{dilated_rnn_forward.1} parent=1 // pred_check_branch
      %1313 = sbr.rel (0) target = $region145
    $region144: #{dilated_rnn_forward.1} parent=1 // pred_region
      _
    $region145: #{dilated_rnn_forward.1} parent=1 // pred_fallthru
      _
    // Predicated region
    $region146: #{dilated_rnn_forward.1} parent=1 // pred_check
      _
    $region147: #{dilated_rnn_forward.1} parent=1 // pred_check_branch
      %1315 = sbr.rel (0) target = $region149
    $region148: #{dilated_rnn_forward.1} parent=1 // pred_region
      _
    $region149: #{dilated_rnn_forward.1} parent=1 // pred_fallthru
      _
    %1316 = vsyncpa [#allocation5], 1
    %1317 = vsyncpa [#allocation7], 1
    %1318 = vsyncpa [#allocation10], 1

</llo_original>
